<compile_context>
chip_gen: v5e
topology: v5e:2x2
jax: 0.10.0
libtpu: 0.0.40
codegen_flags: <defaults>
</compile_context>

<pallas_src>
import jax
import jax.numpy as jnp
import numpy as np
from jax import lax
from jax.experimental import pallas as pl
from jax.experimental.pallas import tpu as pltpu

C_IN, C_OUT, K, STRIDE = 5, 4, 5, 3
NEG_SLOPE = -0.208927
NTAP = -(-K // STRIDE)          # ceil(K / stride) = 2 taps per axis per phase
NW = 32                         # padded cols per W-phase; C_OUT * NW = 128 lanes
LANES = C_OUT * NW              # = 128


def convt_phase_kernel(xsh_ref, w_ref, o_ref):
    # xsh_ref: (1, NTAP*NTAP*C_IN, MH, LANES)  pre-shifted input; at row
    #          (dh*NTAP+dw)*C_IN + ci, lane co*NW+n holds x[ci, m-dh, n-dw]
    #          (0 outside), identical across the 4 co lane blocks.
    # w_ref  : (C_IN*K*K + 1, LANES)  lane-packed weights, row (ci*K+kh)*K+kw,
    #          lane block [co*NW:(co+1)*NW] = w[ci,co,kh,kw]; last row = bias.
    # o_ref  : (1, S*S, MH, LANES)  phase-major output, co packed along lanes.
    S = STRIDE
    MH = o_ref.shape[2]

    # Load each (tap, ci) slab exactly once; each is one (8,128) f32 vreg kept
    # live across all 9 phases (20 slabs + acc + bias << 64 vregs).
    slabs = [[[xsh_ref[0, (dh * NTAP + dw) * C_IN + ci]
               for ci in range(C_IN)]
              for dw in range(NTAP)]
             for dh in range(NTAP)]

    # Bias row: a single sublane broadcast, reused as accumulator init.
    bias = jnp.broadcast_to(w_ref[C_IN * K * K:C_IN * K * K + 1, :], (MH, LANES))

    # y[co, S*m+ph, S*n+pw] = b[co]
    #   + sum_{ci,dh,dw} x[ci, m-dh, n-dw] * w[ci, co, ph+S*dh, pw+S*dw]
    for ph in range(S):
        for pw in range(S):
            acc = bias
            for dh in range(NTAP):
                kh = ph + S * dh
                if kh >= K:
                    continue
                for dw in range(NTAP):
                    kw = pw + S * dw
                    if kw >= K:
                        continue
                    for ci in range(C_IN):
                        flat = (ci * K + kh) * K + kw
                        # one (1,128) weight-row load -> sublane broadcast,
                        # one vmul + one vadd for all 4 output channels.
                        acc = acc + slabs[dh][dw][ci] * w_ref[flat:flat + 1, :]
            x3 = jnp.where(acc > 0, acc, acc * NEG_SLOPE)   # where(x0>0, x0, x0*-0.208927)
            x5 = jnp.clip(-x3, 0.0, 6.0)                    # relu6(neg(x3))
            o_ref[0, ph * S + pw] = x5.astype(o_ref.dtype)  # unmasked (8,128) store


@jax.jit
def conv_transpose_model(x, w, b):
    """x: (N, C_IN, H, W); w: (C_IN, C_OUT, K, K); b: (C_OUT,)."""
    N, C_in, H, W = x.shape
    assert C_in == C_IN
    S = STRIDE
    H_out = (H - 1) * S + K
    W_out = (W - 1) * S + K
    MH = H + NTAP - 1                      # = ceil(H_out / S) rows per H-phase
    assert W + NTAP - 1 <= NW and C_OUT * NW == 128

    xf = x.astype(jnp.float32)
    wf = w.astype(jnp.float32)
    bf = b.astype(jnp.float32)

    # Pre-shifted, zero-padded, lane-replicated input (one tiny fused XLA op):
    # xsh[n, (dh*NTAP+dw)*C_IN+ci, m, co*NW+nn] = x[n, ci, m-dh, nn-dw] (0 outside)
    shifted = [jnp.pad(xf, ((0, 0), (0, 0), (dh, MH - H - dh), (dw, NW - W - dw)))
               for dh in range(NTAP) for dw in range(NTAP)]
    xsh = jnp.stack(shifted, axis=1).reshape(N, NTAP * NTAP * C_IN, MH, NW)
    xsh = jnp.tile(xsh, (1, 1, 1, C_OUT))                      # (N, 20, MH, 128)

    # Lane-packed weight table (row (ci*K+kh)*K+kw) + bias row.
    wt = jnp.transpose(wf, (0, 2, 3, 1)).reshape(C_IN * K * K, C_OUT)
    wtab = jnp.concatenate(
        [jnp.repeat(wt, NW, axis=1),
         jnp.repeat(bf.reshape(1, C_OUT), NW, axis=1)],
        axis=0)                                                # (C_IN*K*K+1, 128)

    y_phase = pl.pallas_call(
        convt_phase_kernel,
        out_shape=jax.ShapeDtypeStruct((N, S * S, MH, LANES), jnp.float32),
        grid=(N,),
        in_specs=[
            pl.BlockSpec((1, NTAP * NTAP * C_IN, MH, LANES), lambda n: (n, 0, 0, 0)),
            pl.BlockSpec((C_IN * K * K + 1, LANES), lambda n: (0, 0)),
        ],
        out_specs=pl.BlockSpec((1, S * S, MH, LANES), lambda n: (n, 0, 0, 0)),
        compiler_params=pltpu.CompilerParams(dimension_semantics=("parallel",)),
    )(xsh, wtab)

    # Phase-major -> NCHW interleave: rows oh = m*S + ph, cols ow = nn*S + pw;
    # out-of-range phase rows/cols and the pad lane are sliced off.
    y = y_phase.reshape(N, S, S, MH, C_OUT, NW)     # (N, ph, pw, m, co, nn)
    y = jnp.transpose(y, (0, 4, 3, 1, 5, 2))        # (N, co, m, ph, nn, pw)
    y = y.reshape(N, C_OUT, MH * S, NW * S)
    return y[:, :, :H_out, :W_out].astype(x.dtype)


def _reference(x, w, b):
    # Pure-JAX reference for the full PyTorch forward (conv_transpose + post-ops).
    w_oihw = jnp.transpose(w, (1, 0, 2, 3))[:, :, ::-1, ::-1]  # (C_OUT, C_IN, K, K) flipped
    x0 = lax.conv_general_dilated(
        x, w_oihw,
        window_strides=(1, 1),
        padding=[(K - 1, K - 1), (K - 1, K - 1)],
        lhs_dilation=(STRIDE, STRIDE),
        dimension_numbers=("NCHW", "OIHW", "NCHW"),
    ) + b.reshape(1, -1, 1, 1)
    x3 = jnp.where(x0 > 0, x0, x0 * NEG_SLOPE)
    return jnp.clip(-x3, 0.0, 6.0)


if __name__ == "__main__":
    key = jax.random.PRNGKey(0)
    kx, kw, kb = jax.random.split(key, 3)

    # Shapes implied by the module: x1 = randn(1, 5, 7, 30); weight (5, 4, 5, 5); bias (4,)
    x = jax.random.normal(kx, (1, C_IN, 7, 30), dtype=jnp.float32)
    w = jax.random.normal(kw, (C_IN, C_OUT, K, K), dtype=jnp.float32) * 0.1
    b = jax.random.normal(kb, (C_OUT,), dtype=jnp.float32) * 0.1

    out = jax.block_until_ready(conv_transpose_model(x, w, b))

    ref = _reference(x, w, b)
    np.testing.assert_allclose(np.asarray(out), np.asarray(ref), rtol=1e-4, atol=1e-4)

    print("KERNEL_OK")
</pallas_src>

<mosaic_0001>
module attributes {stable_mosaic.version = 11 : i64} {
  func.func @convt_phase_kernel(%arg0: i32, %arg1: memref<1x20x8x128xf32, #tpu.memory_space<vmem>>, %arg2: memref<126x128xf32, #tpu.memory_space<vmem>>, %arg3: memref<1x9x8x128xf32, #tpu.memory_space<vmem>>) attributes {dimension_semantics = [#tpu.dimension_semantics<parallel>], iteration_bounds = array<i64: 1>, scalar_prefetch = 0 : i64, scratch_operands = 0 : i64, tpu.core_type = #tpu.core_type<tc>, window_params = [{transform_indices = @transform_0, window_bounds = array<i64: 1, 20, 8, 128>}, {pipeline_mode = #tpu.pipeline_mode<synchronous>, transform_indices = @transform_1, window_bounds = array<i64: 126, 128>}, {transform_indices = @transform_2, window_bounds = array<i64: 1, 9, 8, 128>}]} {
    %c0 = arith.constant 0 : index
    %c0_0 = arith.constant 0 : index
    %c0_1 = arith.constant 0 : index
    %c0_2 = arith.constant 0 : index
    %0 = vector.load %arg1[%c0, %c0_0, %c0_1, %c0_2] : memref<1x20x8x128xf32, #tpu.memory_space<vmem>>, vector<1x1x8x128xf32>
    %1 = vector.shape_cast %0 : vector<1x1x8x128xf32> to vector<8x128xf32>
    %c0_3 = arith.constant 0 : index
    %c1 = arith.constant 1 : index
    %c0_4 = arith.constant 0 : index
    %c0_5 = arith.constant 0 : index
    %2 = vector.load %arg1[%c0_3, %c1, %c0_4, %c0_5] : memref<1x20x8x128xf32, #tpu.memory_space<vmem>>, vector<1x1x8x128xf32>
    %3 = vector.shape_cast %2 : vector<1x1x8x128xf32> to vector<8x128xf32>
    %c0_6 = arith.constant 0 : index
    %c2 = arith.constant 2 : index
    %c0_7 = arith.constant 0 : index
    %c0_8 = arith.constant 0 : index
    %4 = vector.load %arg1[%c0_6, %c2, %c0_7, %c0_8] : memref<1x20x8x128xf32, #tpu.memory_space<vmem>>, vector<1x1x8x128xf32>
    %5 = vector.shape_cast %4 : vector<1x1x8x128xf32> to vector<8x128xf32>
    %c0_9 = arith.constant 0 : index
    %c3 = arith.constant 3 : index
    %c0_10 = arith.constant 0 : index
    %c0_11 = arith.constant 0 : index
    %6 = vector.load %arg1[%c0_9, %c3, %c0_10, %c0_11] : memref<1x20x8x128xf32, #tpu.memory_space<vmem>>, vector<1x1x8x128xf32>
    %7 = vector.shape_cast %6 : vector<1x1x8x128xf32> to vector<8x128xf32>
    %c0_12 = arith.constant 0 : index
    %c4 = arith.constant 4 : index
    %c0_13 = arith.constant 0 : index
    %c0_14 = arith.constant 0 : index
    %8 = vector.load %arg1[%c0_12, %c4, %c0_13, %c0_14] : memref<1x20x8x128xf32, #tpu.memory_space<vmem>>, vector<1x1x8x128xf32>
    %9 = vector.shape_cast %8 : vector<1x1x8x128xf32> to vector<8x128xf32>
    %c0_15 = arith.constant 0 : index
    %c5 = arith.constant 5 : index
    %c0_16 = arith.constant 0 : index
    %c0_17 = arith.constant 0 : index
    %10 = vector.load %arg1[%c0_15, %c5, %c0_16, %c0_17] : memref<1x20x8x128xf32, #tpu.memory_space<vmem>>, vector<1x1x8x128xf32>
    %11 = vector.shape_cast %10 : vector<1x1x8x128xf32> to vector<8x128xf32>
    %c0_18 = arith.constant 0 : index
    %c6 = arith.constant 6 : index
    %c0_19 = arith.constant 0 : index
    %c0_20 = arith.constant 0 : index
    %12 = vector.load %arg1[%c0_18, %c6, %c0_19, %c0_20] : memref<1x20x8x128xf32, #tpu.memory_space<vmem>>, vector<1x1x8x128xf32>
    %13 = vector.shape_cast %12 : vector<1x1x8x128xf32> to vector<8x128xf32>
    %c0_21 = arith.constant 0 : index
    %c7 = arith.constant 7 : index
    %c0_22 = arith.constant 0 : index
    %c0_23 = arith.constant 0 : index
    %14 = vector.load %arg1[%c0_21, %c7, %c0_22, %c0_23] : memref<1x20x8x128xf32, #tpu.memory_space<vmem>>, vector<1x1x8x128xf32>
    %15 = vector.shape_cast %14 : vector<1x1x8x128xf32> to vector<8x128xf32>
    %c0_24 = arith.constant 0 : index
    %c8 = arith.constant 8 : index
    %c0_25 = arith.constant 0 : index
    %c0_26 = arith.constant 0 : index
    %16 = vector.load %arg1[%c0_24, %c8, %c0_25, %c0_26] : memref<1x20x8x128xf32, #tpu.memory_space<vmem>>, vector<1x1x8x128xf32>
    %17 = vector.shape_cast %16 : vector<1x1x8x128xf32> to vector<8x128xf32>
    %c0_27 = arith.constant 0 : index
    %c9 = arith.constant 9 : index
    %c0_28 = arith.constant 0 : index
    %c0_29 = arith.constant 0 : index
    %18 = vector.load %arg1[%c0_27, %c9, %c0_28, %c0_29] : memref<1x20x8x128xf32, #tpu.memory_space<vmem>>, vector<1x1x8x128xf32>
    %19 = vector.shape_cast %18 : vector<1x1x8x128xf32> to vector<8x128xf32>
    %c0_30 = arith.constant 0 : index
    %c10 = arith.constant 10 : index
    %c0_31 = arith.constant 0 : index
    %c0_32 = arith.constant 0 : index
    %20 = vector.load %arg1[%c0_30, %c10, %c0_31, %c0_32] : memref<1x20x8x128xf32, #tpu.memory_space<vmem>>, vector<1x1x8x128xf32>
    %21 = vector.shape_cast %20 : vector<1x1x8x128xf32> to vector<8x128xf32>
    %c0_33 = arith.constant 0 : index
    %c11 = arith.constant 11 : index
    %c0_34 = arith.constant 0 : index
    %c0_35 = arith.constant 0 : index
    %22 = vector.load %arg1[%c0_33, %c11, %c0_34, %c0_35] : memref<1x20x8x128xf32, #tpu.memory_space<vmem>>, vector<1x1x8x128xf32>
    %23 = vector.shape_cast %22 : vector<1x1x8x128xf32> to vector<8x128xf32>
    %c0_36 = arith.constant 0 : index
    %c12 = arith.constant 12 : index
    %c0_37 = arith.constant 0 : index
    %c0_38 = arith.constant 0 : index
    %24 = vector.load %arg1[%c0_36, %c12, %c0_37, %c0_38] : memref<1x20x8x128xf32, #tpu.memory_space<vmem>>, vector<1x1x8x128xf32>
    %25 = vector.shape_cast %24 : vector<1x1x8x128xf32> to vector<8x128xf32>
    %c0_39 = arith.constant 0 : index
    %c13 = arith.constant 13 : index
    %c0_40 = arith.constant 0 : index
    %c0_41 = arith.constant 0 : index
    %26 = vector.load %arg1[%c0_39, %c13, %c0_40, %c0_41] : memref<1x20x8x128xf32, #tpu.memory_space<vmem>>, vector<1x1x8x128xf32>
    %27 = vector.shape_cast %26 : vector<1x1x8x128xf32> to vector<8x128xf32>
    %c0_42 = arith.constant 0 : index
    %c14 = arith.constant 14 : index
    %c0_43 = arith.constant 0 : index
    %c0_44 = arith.constant 0 : index
    %28 = vector.load %arg1[%c0_42, %c14, %c0_43, %c0_44] : memref<1x20x8x128xf32, #tpu.memory_space<vmem>>, vector<1x1x8x128xf32>
    %29 = vector.shape_cast %28 : vector<1x1x8x128xf32> to vector<8x128xf32>
    %c0_45 = arith.constant 0 : index
    %c15 = arith.constant 15 : index
    %c0_46 = arith.constant 0 : index
    %c0_47 = arith.constant 0 : index
    %30 = vector.load %arg1[%c0_45, %c15, %c0_46, %c0_47] : memref<1x20x8x128xf32, #tpu.memory_space<vmem>>, vector<1x1x8x128xf32>
    %31 = vector.shape_cast %30 : vector<1x1x8x128xf32> to vector<8x128xf32>
    %c0_48 = arith.constant 0 : index
    %c16 = arith.constant 16 : index
    %c0_49 = arith.constant 0 : index
    %c0_50 = arith.constant 0 : index
    %32 = vector.load %arg1[%c0_48, %c16, %c0_49, %c0_50] : memref<1x20x8x128xf32, #tpu.memory_space<vmem>>, vector<1x1x8x128xf32>
    %33 = vector.shape_cast %32 : vector<1x1x8x128xf32> to vector<8x128xf32>
    %c0_51 = arith.constant 0 : index
    %c17 = arith.constant 17 : index
    %c0_52 = arith.constant 0 : index
    %c0_53 = arith.constant 0 : index
    %34 = vector.load %arg1[%c0_51, %c17, %c0_52, %c0_53] : memref<1x20x8x128xf32, #tpu.memory_space<vmem>>, vector<1x1x8x128xf32>
    %35 = vector.shape_cast %34 : vector<1x1x8x128xf32> to vector<8x128xf32>
    %c0_54 = arith.constant 0 : index
    %c18 = arith.constant 18 : index
    %c0_55 = arith.constant 0 : index
    %c0_56 = arith.constant 0 : index
    %36 = vector.load %arg1[%c0_54, %c18, %c0_55, %c0_56] : memref<1x20x8x128xf32, #tpu.memory_space<vmem>>, vector<1x1x8x128xf32>
    %37 = vector.shape_cast %36 : vector<1x1x8x128xf32> to vector<8x128xf32>
    %c0_57 = arith.constant 0 : index
    %c19 = arith.constant 19 : index
    %c0_58 = arith.constant 0 : index
    %c0_59 = arith.constant 0 : index
    %38 = vector.load %arg1[%c0_57, %c19, %c0_58, %c0_59] : memref<1x20x8x128xf32, #tpu.memory_space<vmem>>, vector<1x1x8x128xf32>
    %39 = vector.shape_cast %38 : vector<1x1x8x128xf32> to vector<8x128xf32>
    %c125 = arith.constant 125 : index
    %c0_60 = arith.constant 0 : index
    %40 = vector.load %arg2[%c125, %c0_60] : memref<126x128xf32, #tpu.memory_space<vmem>>, vector<1x128xf32>
    %41 = vector.shape_cast %40 : vector<1x128xf32> to vector<1x128xf32>
    %42 = vector.broadcast %41 : vector<1x128xf32> to vector<8x128xf32>
    %c0_61 = arith.constant 0 : index
    %c0_62 = arith.constant 0 : index
    %43 = vector.load %arg2[%c0_61, %c0_62] : memref<126x128xf32, #tpu.memory_space<vmem>>, vector<1x128xf32>
    %44 = vector.broadcast %43 : vector<1x128xf32> to vector<8x128xf32>
    %45 = arith.mulf %1, %44 : vector<8x128xf32>
    %46 = arith.addf %42, %45 : vector<8x128xf32>
    %c25 = arith.constant 25 : index
    %c0_63 = arith.constant 0 : index
    %47 = vector.load %arg2[%c25, %c0_63] : memref<126x128xf32, #tpu.memory_space<vmem>>, vector<1x128xf32>
    %48 = vector.broadcast %47 : vector<1x128xf32> to vector<8x128xf32>
    %49 = arith.mulf %3, %48 : vector<8x128xf32>
    %50 = arith.addf %46, %49 : vector<8x128xf32>
    %c50 = arith.constant 50 : index
    %c0_64 = arith.constant 0 : index
    %51 = vector.load %arg2[%c50, %c0_64] : memref<126x128xf32, #tpu.memory_space<vmem>>, vector<1x128xf32>
    %52 = vector.broadcast %51 : vector<1x128xf32> to vector<8x128xf32>
    %53 = arith.mulf %5, %52 : vector<8x128xf32>
    %54 = arith.addf %50, %53 : vector<8x128xf32>
    %c75 = arith.constant 75 : index
    %c0_65 = arith.constant 0 : index
    %55 = vector.load %arg2[%c75, %c0_65] : memref<126x128xf32, #tpu.memory_space<vmem>>, vector<1x128xf32>
    %56 = vector.broadcast %55 : vector<1x128xf32> to vector<8x128xf32>
    %57 = arith.mulf %7, %56 : vector<8x128xf32>
    %58 = arith.addf %54, %57 : vector<8x128xf32>
    %c100 = arith.constant 100 : index
    %c0_66 = arith.constant 0 : index
    %59 = vector.load %arg2[%c100, %c0_66] : memref<126x128xf32, #tpu.memory_space<vmem>>, vector<1x128xf32>
    %60 = vector.broadcast %59 : vector<1x128xf32> to vector<8x128xf32>
    %61 = arith.mulf %9, %60 : vector<8x128xf32>
    %62 = arith.addf %58, %61 : vector<8x128xf32>
    %c3_67 = arith.constant 3 : index
    %c0_68 = arith.constant 0 : index
    %63 = vector.load %arg2[%c3_67, %c0_68] : memref<126x128xf32, #tpu.memory_space<vmem>>, vector<1x128xf32>
    %64 = vector.broadcast %63 : vector<1x128xf32> to vector<8x128xf32>
    %65 = arith.mulf %11, %64 : vector<8x128xf32>
    %66 = arith.addf %62, %65 : vector<8x128xf32>
    %c28 = arith.constant 28 : index
    %c0_69 = arith.constant 0 : index
    %67 = vector.load %arg2[%c28, %c0_69] : memref<126x128xf32, #tpu.memory_space<vmem>>, vector<1x128xf32>
    %68 = vector.broadcast %67 : vector<1x128xf32> to vector<8x128xf32>
    %69 = arith.mulf %13, %68 : vector<8x128xf32>
    %70 = arith.addf %66, %69 : vector<8x128xf32>
    %c53 = arith.constant 53 : index
    %c0_70 = arith.constant 0 : index
    %71 = vector.load %arg2[%c53, %c0_70] : memref<126x128xf32, #tpu.memory_space<vmem>>, vector<1x128xf32>
    %72 = vector.broadcast %71 : vector<1x128xf32> to vector<8x128xf32>
    %73 = arith.mulf %15, %72 : vector<8x128xf32>
    %74 = arith.addf %70, %73 : vector<8x128xf32>
    %c78 = arith.constant 78 : index
    %c0_71 = arith.constant 0 : index
    %75 = vector.load %arg2[%c78, %c0_71] : memref<126x128xf32, #tpu.memory_space<vmem>>, vector<1x128xf32>
    %76 = vector.broadcast %75 : vector<1x128xf32> to vector<8x128xf32>
    %77 = arith.mulf %17, %76 : vector<8x128xf32>
    %78 = arith.addf %74, %77 : vector<8x128xf32>
    %c103 = arith.constant 103 : index
    %c0_72 = arith.constant 0 : index
    %79 = vector.load %arg2[%c103, %c0_72] : memref<126x128xf32, #tpu.memory_space<vmem>>, vector<1x128xf32>
    %80 = vector.broadcast %79 : vector<1x128xf32> to vector<8x128xf32>
    %81 = arith.mulf %19, %80 : vector<8x128xf32>
    %82 = arith.addf %78, %81 : vector<8x128xf32>
    %c15_73 = arith.constant 15 : index
    %c0_74 = arith.constant 0 : index
    %83 = vector.load %arg2[%c15_73, %c0_74] : memref<126x128xf32, #tpu.memory_space<vmem>>, vector<1x128xf32>
    %84 = vector.broadcast %83 : vector<1x128xf32> to vector<8x128xf32>
    %85 = arith.mulf %21, %84 : vector<8x128xf32>
    %86 = arith.addf %82, %85 : vector<8x128xf32>
    %c40 = arith.constant 40 : index
    %c0_75 = arith.constant 0 : index
    %87 = vector.load %arg2[%c40, %c0_75] : memref<126x128xf32, #tpu.memory_space<vmem>>, vector<1x128xf32>
    %88 = vector.broadcast %87 : vector<1x128xf32> to vector<8x128xf32>
    %89 = arith.mulf %23, %88 : vector<8x128xf32>
    %90 = arith.addf %86, %89 : vector<8x128xf32>
    %c65 = arith.constant 65 : index
    %c0_76 = arith.constant 0 : index
    %91 = vector.load %arg2[%c65, %c0_76] : memref<126x128xf32, #tpu.memory_space<vmem>>, vector<1x128xf32>
    %92 = vector.broadcast %91 : vector<1x128xf32> to vector<8x128xf32>
    %93 = arith.mulf %25, %92 : vector<8x128xf32>
    %94 = arith.addf %90, %93 : vector<8x128xf32>
    %c90 = arith.constant 90 : index
    %c0_77 = arith.constant 0 : index
    %95 = vector.load %arg2[%c90, %c0_77] : memref<126x128xf32, #tpu.memory_space<vmem>>, vector<1x128xf32>
    %96 = vector.broadcast %95 : vector<1x128xf32> to vector<8x128xf32>
    %97 = arith.mulf %27, %96 : vector<8x128xf32>
    %98 = arith.addf %94, %97 : vector<8x128xf32>
    %c115 = arith.constant 115 : index
    %c0_78 = arith.constant 0 : index
    %99 = vector.load %arg2[%c115, %c0_78] : memref<126x128xf32, #tpu.memory_space<vmem>>, vector<1x128xf32>
    %100 = vector.broadcast %99 : vector<1x128xf32> to vector<8x128xf32>
    %101 = arith.mulf %29, %100 : vector<8x128xf32>
    %102 = arith.addf %98, %101 : vector<8x128xf32>
    %c18_79 = arith.constant 18 : index
    %c0_80 = arith.constant 0 : index
    %103 = vector.load %arg2[%c18_79, %c0_80] : memref<126x128xf32, #tpu.memory_space<vmem>>, vector<1x128xf32>
    %104 = vector.broadcast %103 : vector<1x128xf32> to vector<8x128xf32>
    %105 = arith.mulf %31, %104 : vector<8x128xf32>
    %106 = arith.addf %102, %105 : vector<8x128xf32>
    %c43 = arith.constant 43 : index
    %c0_81 = arith.constant 0 : index
    %107 = vector.load %arg2[%c43, %c0_81] : memref<126x128xf32, #tpu.memory_space<vmem>>, vector<1x128xf32>
    %108 = vector.broadcast %107 : vector<1x128xf32> to vector<8x128xf32>
    %109 = arith.mulf %33, %108 : vector<8x128xf32>
    %110 = arith.addf %106, %109 : vector<8x128xf32>
    %c68 = arith.constant 68 : index
    %c0_82 = arith.constant 0 : index
    %111 = vector.load %arg2[%c68, %c0_82] : memref<126x128xf32, #tpu.memory_space<vmem>>, vector<1x128xf32>
    %112 = vector.broadcast %111 : vector<1x128xf32> to vector<8x128xf32>
    %113 = arith.mulf %35, %112 : vector<8x128xf32>
    %114 = arith.addf %110, %113 : vector<8x128xf32>
    %c93 = arith.constant 93 : index
    %c0_83 = arith.constant 0 : index
    %115 = vector.load %arg2[%c93, %c0_83] : memref<126x128xf32, #tpu.memory_space<vmem>>, vector<1x128xf32>
    %116 = vector.broadcast %115 : vector<1x128xf32> to vector<8x128xf32>
    %117 = arith.mulf %37, %116 : vector<8x128xf32>
    %118 = arith.addf %114, %117 : vector<8x128xf32>
    %c118 = arith.constant 118 : index
    %c0_84 = arith.constant 0 : index
    %119 = vector.load %arg2[%c118, %c0_84] : memref<126x128xf32, #tpu.memory_space<vmem>>, vector<1x128xf32>
    %120 = vector.broadcast %119 : vector<1x128xf32> to vector<8x128xf32>
    %121 = arith.mulf %39, %120 : vector<8x128xf32>
    %122 = arith.addf %118, %121 : vector<8x128xf32>
    %cst = arith.constant 0.000000e+00 : f32
    %123 = vector.broadcast %cst : f32 to vector<8x128xf32>
    %124 = arith.cmpf ogt, %122, %123 : vector<8x128xf32>
    %cst_85 = arith.constant -2.089270e-01 : f32
    %125 = vector.broadcast %cst_85 : f32 to vector<8x128xf32>
    %126 = arith.mulf %122, %125 : vector<8x128xf32>
    %127 = arith.select %124, %122, %126 : vector<8x128xi1>, vector<8x128xf32>
    %cst_86 = arith.constant 0.000000e+00 : f32
    %128 = vector.broadcast %cst_86 : f32 to vector<8x128xf32>
    %129 = arith.subf %128, %127 : vector<8x128xf32>
    %cst_87 = arith.constant 0.000000e+00 : f32
    %cst_88 = arith.constant 6.000000e+00 : f32
    %130 = vector.broadcast %cst_87 : f32 to vector<8x128xf32>
    %131 = arith.maximumf %130, %129 : vector<8x128xf32>
    %132 = vector.broadcast %cst_88 : f32 to vector<8x128xf32>
    %133 = arith.minimumf %132, %131 : vector<8x128xf32>
    %c0_89 = arith.constant 0 : index
    %c0_90 = arith.constant 0 : index
    %c0_91 = arith.constant 0 : index
    %c0_92 = arith.constant 0 : index
    %134 = vector.load %arg3[%c0_89, %c0_90, %c0_91, %c0_92] : memref<1x9x8x128xf32, #tpu.memory_space<vmem>>, vector<1x1x8x128xf32>
    %135 = vector.shape_cast %134 : vector<1x1x8x128xf32> to vector<8x128xf32>
    %136 = vector.shape_cast %133 : vector<8x128xf32> to vector<1x1x8x128xf32>
    tpu.vector_store %arg3[%c0_89, %c0_90, %c0_91, %c0_92], %136 {strides = array<i32>} : memref<1x9x8x128xf32, #tpu.memory_space<vmem>>, vector<1x1x8x128xf32>,
    %c1_93 = arith.constant 1 : index
    %c0_94 = arith.constant 0 : index
    %137 = vector.load %arg2[%c1_93, %c0_94] : memref<126x128xf32, #tpu.memory_space<vmem>>, vector<1x128xf32>
    %138 = vector.broadcast %137 : vector<1x128xf32> to vector<8x128xf32>
    %139 = arith.mulf %1, %138 : vector<8x128xf32>
    %140 = arith.addf %42, %139 : vector<8x128xf32>
    %c26 = arith.constant 26 : index
    %c0_95 = arith.constant 0 : index
    %141 = vector.load %arg2[%c26, %c0_95] : memref<126x128xf32, #tpu.memory_space<vmem>>, vector<1x128xf32>
    %142 = vector.broadcast %141 : vector<1x128xf32> to vector<8x128xf32>
    %143 = arith.mulf %3, %142 : vector<8x128xf32>
    %144 = arith.addf %140, %143 : vector<8x128xf32>
    %c51 = arith.constant 51 : index
    %c0_96 = arith.constant 0 : index
    %145 = vector.load %arg2[%c51, %c0_96] : memref<126x128xf32, #tpu.memory_space<vmem>>, vector<1x128xf32>
    %146 = vector.broadcast %145 : vector<1x128xf32> to vector<8x128xf32>
    %147 = arith.mulf %5, %146 : vector<8x128xf32>
    %148 = arith.addf %144, %147 : vector<8x128xf32>
    %c76 = arith.constant 76 : index
    %c0_97 = arith.constant 0 : index
    %149 = vector.load %arg2[%c76, %c0_97] : memref<126x128xf32, #tpu.memory_space<vmem>>, vector<1x128xf32>
    %150 = vector.broadcast %149 : vector<1x128xf32> to vector<8x128xf32>
    %151 = arith.mulf %7, %150 : vector<8x128xf32>
    %152 = arith.addf %148, %151 : vector<8x128xf32>
    %c101 = arith.constant 101 : index
    %c0_98 = arith.constant 0 : index
    %153 = vector.load %arg2[%c101, %c0_98] : memref<126x128xf32, #tpu.memory_space<vmem>>, vector<1x128xf32>
    %154 = vector.broadcast %153 : vector<1x128xf32> to vector<8x128xf32>
    %155 = arith.mulf %9, %154 : vector<8x128xf32>
    %156 = arith.addf %152, %155 : vector<8x128xf32>
    %c4_99 = arith.constant 4 : index
    %c0_100 = arith.constant 0 : index
    %157 = vector.load %arg2[%c4_99, %c0_100] : memref<126x128xf32, #tpu.memory_space<vmem>>, vector<1x128xf32>
    %158 = vector.broadcast %157 : vector<1x128xf32> to vector<8x128xf32>
    %159 = arith.mulf %11, %158 : vector<8x128xf32>
    %160 = arith.addf %156, %159 : vector<8x128xf32>
    %c29 = arith.constant 29 : index
    %c0_101 = arith.constant 0 : index
    %161 = vector.load %arg2[%c29, %c0_101] : memref<126x128xf32, #tpu.memory_space<vmem>>, vector<1x128xf32>
    %162 = vector.broadcast %161 : vector<1x128xf32> to vector<8x128xf32>
    %163 = arith.mulf %13, %162 : vector<8x128xf32>
    %164 = arith.addf %160, %163 : vector<8x128xf32>
    %c54 = arith.constant 54 : index
    %c0_102 = arith.constant 0 : index
    %165 = vector.load %arg2[%c54, %c0_102] : memref<126x128xf32, #tpu.memory_space<vmem>>, vector<1x128xf32>
    %166 = vector.broadcast %165 : vector<1x128xf32> to vector<8x128xf32>
    %167 = arith.mulf %15, %166 : vector<8x128xf32>
    %168 = arith.addf %164, %167 : vector<8x128xf32>
    %c79 = arith.constant 79 : index
    %c0_103 = arith.constant 0 : index
    %169 = vector.load %arg2[%c79, %c0_103] : memref<126x128xf32, #tpu.memory_space<vmem>>, vector<1x128xf32>
    %170 = vector.broadcast %169 : vector<1x128xf32> to vector<8x128xf32>
    %171 = arith.mulf %17, %170 : vector<8x128xf32>
    %172 = arith.addf %168, %171 : vector<8x128xf32>
    %c104 = arith.constant 104 : index
    %c0_104 = arith.constant 0 : index
    %173 = vector.load %arg2[%c104, %c0_104] : memref<126x128xf32, #tpu.memory_space<vmem>>, vector<1x128xf32>
    %174 = vector.broadcast %173 : vector<1x128xf32> to vector<8x128xf32>
    %175 = arith.mulf %19, %174 : vector<8x128xf32>
    %176 = arith.addf %172, %175 : vector<8x128xf32>
    %c16_105 = arith.constant 16 : index
    %c0_106 = arith.constant 0 : index
    %177 = vector.load %arg2[%c16_105, %c0_106] : memref<126x128xf32, #tpu.memory_space<vmem>>, vector<1x128xf32>
    %178 = vector.broadcast %177 : vector<1x128xf32> to vector<8x128xf32>
    %179 = arith.mulf %21, %178 : vector<8x128xf32>
    %180 = arith.addf %176, %179 : vector<8x128xf32>
    %c41 = arith.constant 41 : index
    %c0_107 = arith.constant 0 : index
    %181 = vector.load %arg2[%c41, %c0_107] : memref<126x128xf32, #tpu.memory_space<vmem>>, vector<1x128xf32>
    %182 = vector.broadcast %181 : vector<1x128xf32> to vector<8x128xf32>
    %183 = arith.mulf %23, %182 : vector<8x128xf32>
    %184 = arith.addf %180, %183 : vector<8x128xf32>
    %c66 = arith.constant 66 : index
    %c0_108 = arith.constant 0 : index
    %185 = vector.load %arg2[%c66, %c0_108] : memref<126x128xf32, #tpu.memory_space<vmem>>, vector<1x128xf32>
    %186 = vector.broadcast %185 : vector<1x128xf32> to vector<8x128xf32>
    %187 = arith.mulf %25, %186 : vector<8x128xf32>
    %188 = arith.addf %184, %187 : vector<8x128xf32>
    %c91 = arith.constant 91 : index
    %c0_109 = arith.constant 0 : index
    %189 = vector.load %arg2[%c91, %c0_109] : memref<126x128xf32, #tpu.memory_space<vmem>>, vector<1x128xf32>
    %190 = vector.broadcast %189 : vector<1x128xf32> to vector<8x128xf32>
    %191 = arith.mulf %27, %190 : vector<8x128xf32>
    %192 = arith.addf %188, %191 : vector<8x128xf32>
    %c116 = arith.constant 116 : index
    %c0_110 = arith.constant 0 : index
    %193 = vector.load %arg2[%c116, %c0_110] : memref<126x128xf32, #tpu.memory_space<vmem>>, vector<1x128xf32>
    %194 = vector.broadcast %193 : vector<1x128xf32> to vector<8x128xf32>
    %195 = arith.mulf %29, %194 : vector<8x128xf32>
    %196 = arith.addf %192, %195 : vector<8x128xf32>
    %c19_111 = arith.constant 19 : index
    %c0_112 = arith.constant 0 : index
    %197 = vector.load %arg2[%c19_111, %c0_112] : memref<126x128xf32, #tpu.memory_space<vmem>>, vector<1x128xf32>
    %198 = vector.broadcast %197 : vector<1x128xf32> to vector<8x128xf32>
    %199 = arith.mulf %31, %198 : vector<8x128xf32>
    %200 = arith.addf %196, %199 : vector<8x128xf32>
    %c44 = arith.constant 44 : index
    %c0_113 = arith.constant 0 : index
    %201 = vector.load %arg2[%c44, %c0_113] : memref<126x128xf32, #tpu.memory_space<vmem>>, vector<1x128xf32>
    %202 = vector.broadcast %201 : vector<1x128xf32> to vector<8x128xf32>
    %203 = arith.mulf %33, %202 : vector<8x128xf32>
    %204 = arith.addf %200, %203 : vector<8x128xf32>
    %c69 = arith.constant 69 : index
    %c0_114 = arith.constant 0 : index
    %205 = vector.load %arg2[%c69, %c0_114] : memref<126x128xf32, #tpu.memory_space<vmem>>, vector<1x128xf32>
    %206 = vector.broadcast %205 : vector<1x128xf32> to vector<8x128xf32>
    %207 = arith.mulf %35, %206 : vector<8x128xf32>
    %208 = arith.addf %204, %207 : vector<8x128xf32>
    %c94 = arith.constant 94 : index
    %c0_115 = arith.constant 0 : index
    %209 = vector.load %arg2[%c94, %c0_115] : memref<126x128xf32, #tpu.memory_space<vmem>>, vector<1x128xf32>
    %210 = vector.broadcast %209 : vector<1x128xf32> to vector<8x128xf32>
    %211 = arith.mulf %37, %210 : vector<8x128xf32>
    %212 = arith.addf %208, %211 : vector<8x128xf32>
    %c119 = arith.constant 119 : index
    %c0_116 = arith.constant 0 : index
    %213 = vector.load %arg2[%c119, %c0_116] : memref<126x128xf32, #tpu.memory_space<vmem>>, vector<1x128xf32>
    %214 = vector.broadcast %213 : vector<1x128xf32> to vector<8x128xf32>
    %215 = arith.mulf %39, %214 : vector<8x128xf32>
    %216 = arith.addf %212, %215 : vector<8x128xf32>
    %cst_117 = arith.constant 0.000000e+00 : f32
    %217 = vector.broadcast %cst_117 : f32 to vector<8x128xf32>
    %218 = arith.cmpf ogt, %216, %217 : vector<8x128xf32>
    %cst_118 = arith.constant -2.089270e-01 : f32
    %219 = vector.broadcast %cst_118 : f32 to vector<8x128xf32>
    %220 = arith.mulf %216, %219 : vector<8x128xf32>
    %221 = arith.select %218, %216, %220 : vector<8x128xi1>, vector<8x128xf32>
    %cst_119 = arith.constant 0.000000e+00 : f32
    %222 = vector.broadcast %cst_119 : f32 to vector<8x128xf32>
    %223 = arith.subf %222, %221 : vector<8x128xf32>
    %cst_120 = arith.constant 0.000000e+00 : f32
    %cst_121 = arith.constant 6.000000e+00 : f32
    %224 = vector.broadcast %cst_120 : f32 to vector<8x128xf32>
    %225 = arith.maximumf %224, %223 : vector<8x128xf32>
    %226 = vector.broadcast %cst_121 : f32 to vector<8x128xf32>
    %227 = arith.minimumf %226, %225 : vector<8x128xf32>
    %c0_122 = arith.constant 0 : index
    %c1_123 = arith.constant 1 : index
    %c0_124 = arith.constant 0 : index
    %c0_125 = arith.constant 0 : index
    %228 = vector.load %arg3[%c0_122, %c1_123, %c0_124, %c0_125] : memref<1x9x8x128xf32, #tpu.memory_space<vmem>>, vector<1x1x8x128xf32>
    %229 = vector.shape_cast %228 : vector<1x1x8x128xf32> to vector<8x128xf32>
    %230 = vector.shape_cast %227 : vector<8x128xf32> to vector<1x1x8x128xf32>
    tpu.vector_store %arg3[%c0_122, %c1_123, %c0_124, %c0_125], %230 {strides = array<i32>} : memref<1x9x8x128xf32, #tpu.memory_space<vmem>>, vector<1x1x8x128xf32>,
    %c2_126 = arith.constant 2 : index
    %c0_127 = arith.constant 0 : index
    %231 = vector.load %arg2[%c2_126, %c0_127] : memref<126x128xf32, #tpu.memory_space<vmem>>, vector<1x128xf32>
    %232 = vector.broadcast %231 : vector<1x128xf32> to vector<8x128xf32>
    %233 = arith.mulf %1, %232 : vector<8x128xf32>
    %234 = arith.addf %42, %233 : vector<8x128xf32>
    %c27 = arith.constant 27 : index
    %c0_128 = arith.constant 0 : index
    %235 = vector.load %arg2[%c27, %c0_128] : memref<126x128xf32, #tpu.memory_space<vmem>>, vector<1x128xf32>
    %236 = vector.broadcast %235 : vector<1x128xf32> to vector<8x128xf32>
    %237 = arith.mulf %3, %236 : vector<8x128xf32>
    %238 = arith.addf %234, %237 : vector<8x128xf32>
    %c52 = arith.constant 52 : index
    %c0_129 = arith.constant 0 : index
    %239 = vector.load %arg2[%c52, %c0_129] : memref<126x128xf32, #tpu.memory_space<vmem>>, vector<1x128xf32>
    %240 = vector.broadcast %239 : vector<1x128xf32> to vector<8x128xf32>
    %241 = arith.mulf %5, %240 : vector<8x128xf32>
    %242 = arith.addf %238, %241 : vector<8x128xf32>
    %c77 = arith.constant 77 : index
    %c0_130 = arith.constant 0 : index
    %243 = vector.load %arg2[%c77, %c0_130] : memref<126x128xf32, #tpu.memory_space<vmem>>, vector<1x128xf32>
    %244 = vector.broadcast %243 : vector<1x128xf32> to vector<8x128xf32>
    %245 = arith.mulf %7, %244 : vector<8x128xf32>
    %246 = arith.addf %242, %245 : vector<8x128xf32>
    %c102 = arith.constant 102 : index
    %c0_131 = arith.constant 0 : index
    %247 = vector.load %arg2[%c102, %c0_131] : memref<126x128xf32, #tpu.memory_space<vmem>>, vector<1x128xf32>
    %248 = vector.broadcast %247 : vector<1x128xf32> to vector<8x128xf32>
    %249 = arith.mulf %9, %248 : vector<8x128xf32>
    %250 = arith.addf %246, %249 : vector<8x128xf32>
    %c17_132 = arith.constant 17 : index
    %c0_133 = arith.constant 0 : index
    %251 = vector.load %arg2[%c17_132, %c0_133] : memref<126x128xf32, #tpu.memory_space<vmem>>, vector<1x128xf32>
    %252 = vector.broadcast %251 : vector<1x128xf32> to vector<8x128xf32>
    %253 = arith.mulf %21, %252 : vector<8x128xf32>
    %254 = arith.addf %250, %253 : vector<8x128xf32>
    %c42 = arith.constant 42 : index
    %c0_134 = arith.constant 0 : index
    %255 = vector.load %arg2[%c42, %c0_134] : memref<126x128xf32, #tpu.memory_space<vmem>>, vector<1x128xf32>
    %256 = vector.broadcast %255 : vector<1x128xf32> to vector<8x128xf32>
    %257 = arith.mulf %23, %256 : vector<8x128xf32>
    %258 = arith.addf %254, %257 : vector<8x128xf32>
    %c67 = arith.constant 67 : index
    %c0_135 = arith.constant 0 : index
    %259 = vector.load %arg2[%c67, %c0_135] : memref<126x128xf32, #tpu.memory_space<vmem>>, vector<1x128xf32>
    %260 = vector.broadcast %259 : vector<1x128xf32> to vector<8x128xf32>
    %261 = arith.mulf %25, %260 : vector<8x128xf32>
    %262 = arith.addf %258, %261 : vector<8x128xf32>
    %c92 = arith.constant 92 : index
    %c0_136 = arith.constant 0 : index
    %263 = vector.load %arg2[%c92, %c0_136] : memref<126x128xf32, #tpu.memory_space<vmem>>, vector<1x128xf32>
    %264 = vector.broadcast %263 : vector<1x128xf32> to vector<8x128xf32>
    %265 = arith.mulf %27, %264 : vector<8x128xf32>
    %266 = arith.addf %262, %265 : vector<8x128xf32>
    %c117 = arith.constant 117 : index
    %c0_137 = arith.constant 0 : index
    %267 = vector.load %arg2[%c117, %c0_137] : memref<126x128xf32, #tpu.memory_space<vmem>>, vector<1x128xf32>
    %268 = vector.broadcast %267 : vector<1x128xf32> to vector<8x128xf32>
    %269 = arith.mulf %29, %268 : vector<8x128xf32>
    %270 = arith.addf %266, %269 : vector<8x128xf32>
    %cst_138 = arith.constant 0.000000e+00 : f32
    %271 = vector.broadcast %cst_138 : f32 to vector<8x128xf32>
    %272 = arith.cmpf ogt, %270, %271 : vector<8x128xf32>
    %cst_139 = arith.constant -2.089270e-01 : f32
    %273 = vector.broadcast %cst_139 : f32 to vector<8x128xf32>
    %274 = arith.mulf %270, %273 : vector<8x128xf32>
    %275 = arith.select %272, %270, %274 : vector<8x128xi1>, vector<8x128xf32>
    %cst_140 = arith.constant 0.000000e+00 : f32
    %276 = vector.broadcast %cst_140 : f32 to vector<8x128xf32>
    %277 = arith.subf %276, %275 : vector<8x128xf32>
    %cst_141 = arith.constant 0.000000e+00 : f32
    %cst_142 = arith.constant 6.000000e+00 : f32
    %278 = vector.broadcast %cst_141 : f32 to vector<8x128xf32>
    %279 = arith.maximumf %278, %277 : vector<8x128xf32>
    %280 = vector.broadcast %cst_142 : f32 to vector<8x128xf32>
    %281 = arith.minimumf %280, %279 : vector<8x128xf32>
    %c0_143 = arith.constant 0 : index
    %c2_144 = arith.constant 2 : index
    %c0_145 = arith.constant 0 : index
    %c0_146 = arith.constant 0 : index
    %282 = vector.load %arg3[%c0_143, %c2_144, %c0_145, %c0_146] : memref<1x9x8x128xf32, #tpu.memory_space<vmem>>, vector<1x1x8x128xf32>
    %283 = vector.shape_cast %282 : vector<1x1x8x128xf32> to vector<8x128xf32>
    %284 = vector.shape_cast %281 : vector<8x128xf32> to vector<1x1x8x128xf32>
    tpu.vector_store %arg3[%c0_143, %c2_144, %c0_145, %c0_146], %284 {strides = array<i32>} : memref<1x9x8x128xf32, #tpu.memory_space<vmem>>, vector<1x1x8x128xf32>,
    %c5_147 = arith.constant 5 : index
    %c0_148 = arith.constant 0 : index
    %285 = vector.load %arg2[%c5_147, %c0_148] : memref<126x128xf32, #tpu.memory_space<vmem>>, vector<1x128xf32>
    %286 = vector.broadcast %285 : vector<1x128xf32> to vector<8x128xf32>
    %287 = arith.mulf %1, %286 : vector<8x128xf32>
    %288 = arith.addf %42, %287 : vector<8x128xf32>
    %c30 = arith.constant 30 : index
    %c0_149 = arith.constant 0 : index
    %289 = vector.load %arg2[%c30, %c0_149] : memref<126x128xf32, #tpu.memory_space<vmem>>, vector<1x128xf32>
    %290 = vector.broadcast %289 : vector<1x128xf32> to vector<8x128xf32>
    %291 = arith.mulf %3, %290 : vector<8x128xf32>
    %292 = arith.addf %288, %291 : vector<8x128xf32>
    %c55 = arith.constant 55 : index
    %c0_150 = arith.constant 0 : index
    %293 = vector.load %arg2[%c55, %c0_150] : memref<126x128xf32, #tpu.memory_space<vmem>>, vector<1x128xf32>
    %294 = vector.broadcast %293 : vector<1x128xf32> to vector<8x128xf32>
    %295 = arith.mulf %5, %294 : vector<8x128xf32>
    %296 = arith.addf %292, %295 : vector<8x128xf32>
    %c80 = arith.constant 80 : index
    %c0_151 = arith.constant 0 : index
    %297 = vector.load %arg2[%c80, %c0_151] : memref<126x128xf32, #tpu.memory_space<vmem>>, vector<1x128xf32>
    %298 = vector.broadcast %297 : vector<1x128xf32> to vector<8x128xf32>
    %299 = arith.mulf %7, %298 : vector<8x128xf32>
    %300 = arith.addf %296, %299 : vector<8x128xf32>
    %c105 = arith.constant 105 : index
    %c0_152 = arith.constant 0 : index
    %301 = vector.load %arg2[%c105, %c0_152] : memref<126x128xf32, #tpu.memory_space<vmem>>, vector<1x128xf32>
    %302 = vector.broadcast %301 : vector<1x128xf32> to vector<8x128xf32>
    %303 = arith.mulf %9, %302 : vector<8x128xf32>
    %304 = arith.addf %300, %303 : vector<8x128xf32>
    %c8_153 = arith.constant 8 : index
    %c0_154 = arith.constant 0 : index
    %305 = vector.load %arg2[%c8_153, %c0_154] : memref<126x128xf32, #tpu.memory_space<vmem>>, vector<1x128xf32>
    %306 = vector.broadcast %305 : vector<1x128xf32> to vector<8x128xf32>
    %307 = arith.mulf %11, %306 : vector<8x128xf32>
    %308 = arith.addf %304, %307 : vector<8x128xf32>
    %c33 = arith.constant 33 : index
    %c0_155 = arith.constant 0 : index
    %309 = vector.load %arg2[%c33, %c0_155] : memref<126x128xf32, #tpu.memory_space<vmem>>, vector<1x128xf32>
    %310 = vector.broadcast %309 : vector<1x128xf32> to vector<8x128xf32>
    %311 = arith.mulf %13, %310 : vector<8x128xf32>
    %312 = arith.addf %308, %311 : vector<8x128xf32>
    %c58 = arith.constant 58 : index
    %c0_156 = arith.constant 0 : index
    %313 = vector.load %arg2[%c58, %c0_156] : memref<126x128xf32, #tpu.memory_space<vmem>>, vector<1x128xf32>
    %314 = vector.broadcast %313 : vector<1x128xf32> to vector<8x128xf32>
    %315 = arith.mulf %15, %314 : vector<8x128xf32>
    %316 = arith.addf %312, %315 : vector<8x128xf32>
    %c83 = arith.constant 83 : index
    %c0_157 = arith.constant 0 : index
    %317 = vector.load %arg2[%c83, %c0_157] : memref<126x128xf32, #tpu.memory_space<vmem>>, vector<1x128xf32>
    %318 = vector.broadcast %317 : vector<1x128xf32> to vector<8x128xf32>
    %319 = arith.mulf %17, %318 : vector<8x128xf32>
    %320 = arith.addf %316, %319 : vector<8x128xf32>
    %c108 = arith.constant 108 : index
    %c0_158 = arith.constant 0 : index
    %321 = vector.load %arg2[%c108, %c0_158] : memref<126x128xf32, #tpu.memory_space<vmem>>, vector<1x128xf32>
    %322 = vector.broadcast %321 : vector<1x128xf32> to vector<8x128xf32>
    %323 = arith.mulf %19, %322 : vector<8x128xf32>
    %324 = arith.addf %320, %323 : vector<8x128xf32>
    %c20 = arith.constant 20 : index
    %c0_159 = arith.constant 0 : index
    %325 = vector.load %arg2[%c20, %c0_159] : memref<126x128xf32, #tpu.memory_space<vmem>>, vector<1x128xf32>
    %326 = vector.broadcast %325 : vector<1x128xf32> to vector<8x128xf32>
    %327 = arith.mulf %21, %326 : vector<8x128xf32>
    %328 = arith.addf %324, %327 : vector<8x128xf32>
    %c45 = arith.constant 45 : index
    %c0_160 = arith.constant 0 : index
    %329 = vector.load %arg2[%c45, %c0_160] : memref<126x128xf32, #tpu.memory_space<vmem>>, vector<1x128xf32>
    %330 = vector.broadcast %329 : vector<1x128xf32> to vector<8x128xf32>
    %331 = arith.mulf %23, %330 : vector<8x128xf32>
    %332 = arith.addf %328, %331 : vector<8x128xf32>
    %c70 = arith.constant 70 : index
    %c0_161 = arith.constant 0 : index
    %333 = vector.load %arg2[%c70, %c0_161] : memref<126x128xf32, #tpu.memory_space<vmem>>, vector<1x128xf32>
    %334 = vector.broadcast %333 : vector<1x128xf32> to vector<8x128xf32>
    %335 = arith.mulf %25, %334 : vector<8x128xf32>
    %336 = arith.addf %332, %335 : vector<8x128xf32>
    %c95 = arith.constant 95 : index
    %c0_162 = arith.constant 0 : index
    %337 = vector.load %arg2[%c95, %c0_162] : memref<126x128xf32, #tpu.memory_space<vmem>>, vector<1x128xf32>
    %338 = vector.broadcast %337 : vector<1x128xf32> to vector<8x128xf32>
    %339 = arith.mulf %27, %338 : vector<8x128xf32>
    %340 = arith.addf %336, %339 : vector<8x128xf32>
    %c120 = arith.constant 120 : index
    %c0_163 = arith.constant 0 : index
    %341 = vector.load %arg2[%c120, %c0_163] : memref<126x128xf32, #tpu.memory_space<vmem>>, vector<1x128xf32>
    %342 = vector.broadcast %341 : vector<1x128xf32> to vector<8x128xf32>
    %343 = arith.mulf %29, %342 : vector<8x128xf32>
    %344 = arith.addf %340, %343 : vector<8x128xf32>
    %c23 = arith.constant 23 : index
    %c0_164 = arith.constant 0 : index
    %345 = vector.load %arg2[%c23, %c0_164] : memref<126x128xf32, #tpu.memory_space<vmem>>, vector<1x128xf32>
    %346 = vector.broadcast %345 : vector<1x128xf32> to vector<8x128xf32>
    %347 = arith.mulf %31, %346 : vector<8x128xf32>
    %348 = arith.addf %344, %347 : vector<8x128xf32>
    %c48 = arith.constant 48 : index
    %c0_165 = arith.constant 0 : index
    %349 = vector.load %arg2[%c48, %c0_165] : memref<126x128xf32, #tpu.memory_space<vmem>>, vector<1x128xf32>
    %350 = vector.broadcast %349 : vector<1x128xf32> to vector<8x128xf32>
    %351 = arith.mulf %33, %350 : vector<8x128xf32>
    %352 = arith.addf %348, %351 : vector<8x128xf32>
    %c73 = arith.constant 73 : index
    %c0_166 = arith.constant 0 : index
    %353 = vector.load %arg2[%c73, %c0_166] : memref<126x128xf32, #tpu.memory_space<vmem>>, vector<1x128xf32>
    %354 = vector.broadcast %353 : vector<1x128xf32> to vector<8x128xf32>
    %355 = arith.mulf %35, %354 : vector<8x128xf32>
    %356 = arith.addf %352, %355 : vector<8x128xf32>
    %c98 = arith.constant 98 : index
    %c0_167 = arith.constant 0 : index
    %357 = vector.load %arg2[%c98, %c0_167] : memref<126x128xf32, #tpu.memory_space<vmem>>, vector<1x128xf32>
    %358 = vector.broadcast %357 : vector<1x128xf32> to vector<8x128xf32>
    %359 = arith.mulf %37, %358 : vector<8x128xf32>
    %360 = arith.addf %356, %359 : vector<8x128xf32>
    %c123 = arith.constant 123 : index
    %c0_168 = arith.constant 0 : index
    %361 = vector.load %arg2[%c123, %c0_168] : memref<126x128xf32, #tpu.memory_space<vmem>>, vector<1x128xf32>
    %362 = vector.broadcast %361 : vector<1x128xf32> to vector<8x128xf32>
    %363 = arith.mulf %39, %362 : vector<8x128xf32>
    %364 = arith.addf %360, %363 : vector<8x128xf32>
    %cst_169 = arith.constant 0.000000e+00 : f32
    %365 = vector.broadcast %cst_169 : f32 to vector<8x128xf32>
    %366 = arith.cmpf ogt, %364, %365 : vector<8x128xf32>
    %cst_170 = arith.constant -2.089270e-01 : f32
    %367 = vector.broadcast %cst_170 : f32 to vector<8x128xf32>
    %368 = arith.mulf %364, %367 : vector<8x128xf32>
    %369 = arith.select %366, %364, %368 : vector<8x128xi1>, vector<8x128xf32>
    %cst_171 = arith.constant 0.000000e+00 : f32
    %370 = vector.broadcast %cst_171 : f32 to vector<8x128xf32>
    %371 = arith.subf %370, %369 : vector<8x128xf32>
    %cst_172 = arith.constant 0.000000e+00 : f32
    %cst_173 = arith.constant 6.000000e+00 : f32
    %372 = vector.broadcast %cst_172 : f32 to vector<8x128xf32>
    %373 = arith.maximumf %372, %371 : vector<8x128xf32>
    %374 = vector.broadcast %cst_173 : f32 to vector<8x128xf32>
    %375 = arith.minimumf %374, %373 : vector<8x128xf32>
    %c0_174 = arith.constant 0 : index
    %c3_175 = arith.constant 3 : index
    %c0_176 = arith.constant 0 : index
    %c0_177 = arith.constant 0 : index
    %376 = vector.load %arg3[%c0_174, %c3_175, %c0_176, %c0_177] : memref<1x9x8x128xf32, #tpu.memory_space<vmem>>, vector<1x1x8x128xf32>
    %377 = vector.shape_cast %376 : vector<1x1x8x128xf32> to vector<8x128xf32>
    %378 = vector.shape_cast %375 : vector<8x128xf32> to vector<1x1x8x128xf32>
    tpu.vector_store %arg3[%c0_174, %c3_175, %c0_176, %c0_177], %378 {strides = array<i32>} : memref<1x9x8x128xf32, #tpu.memory_space<vmem>>, vector<1x1x8x128xf32>,
    %c6_178 = arith.constant 6 : index
    %c0_179 = arith.constant 0 : index
    %379 = vector.load %arg2[%c6_178, %c0_179] : memref<126x128xf32, #tpu.memory_space<vmem>>, vector<1x128xf32>
    %380 = vector.broadcast %379 : vector<1x128xf32> to vector<8x128xf32>
    %381 = arith.mulf %1, %380 : vector<8x128xf32>
    %382 = arith.addf %42, %381 : vector<8x128xf32>
    %c31 = arith.constant 31 : index
    %c0_180 = arith.constant 0 : index
    %383 = vector.load %arg2[%c31, %c0_180] : memref<126x128xf32, #tpu.memory_space<vmem>>, vector<1x128xf32>
    %384 = vector.broadcast %383 : vector<1x128xf32> to vector<8x128xf32>
    %385 = arith.mulf %3, %384 : vector<8x128xf32>
    %386 = arith.addf %382, %385 : vector<8x128xf32>
    %c56 = arith.constant 56 : index
    %c0_181 = arith.constant 0 : index
    %387 = vector.load %arg2[%c56, %c0_181] : memref<126x128xf32, #tpu.memory_space<vmem>>, vector<1x128xf32>
    %388 = vector.broadcast %387 : vector<1x128xf32> to vector<8x128xf32>
    %389 = arith.mulf %5, %388 : vector<8x128xf32>
    %390 = arith.addf %386, %389 : vector<8x128xf32>
    %c81 = arith.constant 81 : index
    %c0_182 = arith.constant 0 : index
    %391 = vector.load %arg2[%c81, %c0_182] : memref<126x128xf32, #tpu.memory_space<vmem>>, vector<1x128xf32>
    %392 = vector.broadcast %391 : vector<1x128xf32> to vector<8x128xf32>
    %393 = arith.mulf %7, %392 : vector<8x128xf32>
    %394 = arith.addf %390, %393 : vector<8x128xf32>
    %c106 = arith.constant 106 : index
    %c0_183 = arith.constant 0 : index
    %395 = vector.load %arg2[%c106, %c0_183] : memref<126x128xf32, #tpu.memory_space<vmem>>, vector<1x128xf32>
    %396 = vector.broadcast %395 : vector<1x128xf32> to vector<8x128xf32>
    %397 = arith.mulf %9, %396 : vector<8x128xf32>
    %398 = arith.addf %394, %397 : vector<8x128xf32>
    %c9_184 = arith.constant 9 : index
    %c0_185 = arith.constant 0 : index
    %399 = vector.load %arg2[%c9_184, %c0_185] : memref<126x128xf32, #tpu.memory_space<vmem>>, vector<1x128xf32>
    %400 = vector.broadcast %399 : vector<1x128xf32> to vector<8x128xf32>
    %401 = arith.mulf %11, %400 : vector<8x128xf32>
    %402 = arith.addf %398, %401 : vector<8x128xf32>
    %c34 = arith.constant 34 : index
    %c0_186 = arith.constant 0 : index
    %403 = vector.load %arg2[%c34, %c0_186] : memref<126x128xf32, #tpu.memory_space<vmem>>, vector<1x128xf32>
    %404 = vector.broadcast %403 : vector<1x128xf32> to vector<8x128xf32>
    %405 = arith.mulf %13, %404 : vector<8x128xf32>
    %406 = arith.addf %402, %405 : vector<8x128xf32>
    %c59 = arith.constant 59 : index
    %c0_187 = arith.constant 0 : index
    %407 = vector.load %arg2[%c59, %c0_187] : memref<126x128xf32, #tpu.memory_space<vmem>>, vector<1x128xf32>
    %408 = vector.broadcast %407 : vector<1x128xf32> to vector<8x128xf32>
    %409 = arith.mulf %15, %408 : vector<8x128xf32>
    %410 = arith.addf %406, %409 : vector<8x128xf32>
    %c84 = arith.constant 84 : index
    %c0_188 = arith.constant 0 : index
    %411 = vector.load %arg2[%c84, %c0_188] : memref<126x128xf32, #tpu.memory_space<vmem>>, vector<1x128xf32>
    %412 = vector.broadcast %411 : vector<1x128xf32> to vector<8x128xf32>
    %413 = arith.mulf %17, %412 : vector<8x128xf32>
    %414 = arith.addf %410, %413 : vector<8x128xf32>
    %c109 = arith.constant 109 : index
    %c0_189 = arith.constant 0 : index
    %415 = vector.load %arg2[%c109, %c0_189] : memref<126x128xf32, #tpu.memory_space<vmem>>, vector<1x128xf32>
    %416 = vector.broadcast %415 : vector<1x128xf32> to vector<8x128xf32>
    %417 = arith.mulf %19, %416 : vector<8x128xf32>
    %418 = arith.addf %414, %417 : vector<8x128xf32>
    %c21 = arith.constant 21 : index
    %c0_190 = arith.constant 0 : index
    %419 = vector.load %arg2[%c21, %c0_190] : memref<126x128xf32, #tpu.memory_space<vmem>>, vector<1x128xf32>
    %420 = vector.broadcast %419 : vector<1x128xf32> to vector<8x128xf32>
    %421 = arith.mulf %21, %420 : vector<8x128xf32>
    %422 = arith.addf %418, %421 : vector<8x128xf32>
    %c46 = arith.constant 46 : index
    %c0_191 = arith.constant 0 : index
    %423 = vector.load %arg2[%c46, %c0_191] : memref<126x128xf32, #tpu.memory_space<vmem>>, vector<1x128xf32>
    %424 = vector.broadcast %423 : vector<1x128xf32> to vector<8x128xf32>
    %425 = arith.mulf %23, %424 : vector<8x128xf32>
    %426 = arith.addf %422, %425 : vector<8x128xf32>
    %c71 = arith.constant 71 : index
    %c0_192 = arith.constant 0 : index
    %427 = vector.load %arg2[%c71, %c0_192] : memref<126x128xf32, #tpu.memory_space<vmem>>, vector<1x128xf32>
    %428 = vector.broadcast %427 : vector<1x128xf32> to vector<8x128xf32>
    %429 = arith.mulf %25, %428 : vector<8x128xf32>
    %430 = arith.addf %426, %429 : vector<8x128xf32>
    %c96 = arith.constant 96 : index
    %c0_193 = arith.constant 0 : index
    %431 = vector.load %arg2[%c96, %c0_193] : memref<126x128xf32, #tpu.memory_space<vmem>>, vector<1x128xf32>
    %432 = vector.broadcast %431 : vector<1x128xf32> to vector<8x128xf32>
    %433 = arith.mulf %27, %432 : vector<8x128xf32>
    %434 = arith.addf %430, %433 : vector<8x128xf32>
    %c121 = arith.constant 121 : index
    %c0_194 = arith.constant 0 : index
    %435 = vector.load %arg2[%c121, %c0_194] : memref<126x128xf32, #tpu.memory_space<vmem>>, vector<1x128xf32>
    %436 = vector.broadcast %435 : vector<1x128xf32> to vector<8x128xf32>
    %437 = arith.mulf %29, %436 : vector<8x128xf32>
    %438 = arith.addf %434, %437 : vector<8x128xf32>
    %c24 = arith.constant 24 : index
    %c0_195 = arith.constant 0 : index
    %439 = vector.load %arg2[%c24, %c0_195] : memref<126x128xf32, #tpu.memory_space<vmem>>, vector<1x128xf32>
    %440 = vector.broadcast %439 : vector<1x128xf32> to vector<8x128xf32>
    %441 = arith.mulf %31, %440 : vector<8x128xf32>
    %442 = arith.addf %438, %441 : vector<8x128xf32>
    %c49 = arith.constant 49 : index
    %c0_196 = arith.constant 0 : index
    %443 = vector.load %arg2[%c49, %c0_196] : memref<126x128xf32, #tpu.memory_space<vmem>>, vector<1x128xf32>
    %444 = vector.broadcast %443 : vector<1x128xf32> to vector<8x128xf32>
    %445 = arith.mulf %33, %444 : vector<8x128xf32>
    %446 = arith.addf %442, %445 : vector<8x128xf32>
    %c74 = arith.constant 74 : index
    %c0_197 = arith.constant 0 : index
    %447 = vector.load %arg2[%c74, %c0_197] : memref<126x128xf32, #tpu.memory_space<vmem>>, vector<1x128xf32>
    %448 = vector.broadcast %447 : vector<1x128xf32> to vector<8x128xf32>
    %449 = arith.mulf %35, %448 : vector<8x128xf32>
    %450 = arith.addf %446, %449 : vector<8x128xf32>
    %c99 = arith.constant 99 : index
    %c0_198 = arith.constant 0 : index
    %451 = vector.load %arg2[%c99, %c0_198] : memref<126x128xf32, #tpu.memory_space<vmem>>, vector<1x128xf32>
    %452 = vector.broadcast %451 : vector<1x128xf32> to vector<8x128xf32>
    %453 = arith.mulf %37, %452 : vector<8x128xf32>
    %454 = arith.addf %450, %453 : vector<8x128xf32>
    %c124 = arith.constant 124 : index
    %c0_199 = arith.constant 0 : index
    %455 = vector.load %arg2[%c124, %c0_199] : memref<126x128xf32, #tpu.memory_space<vmem>>, vector<1x128xf32>
    %456 = vector.broadcast %455 : vector<1x128xf32> to vector<8x128xf32>
    %457 = arith.mulf %39, %456 : vector<8x128xf32>
    %458 = arith.addf %454, %457 : vector<8x128xf32>
    %cst_200 = arith.constant 0.000000e+00 : f32
    %459 = vector.broadcast %cst_200 : f32 to vector<8x128xf32>
    %460 = arith.cmpf ogt, %458, %459 : vector<8x128xf32>
    %cst_201 = arith.constant -2.089270e-01 : f32
    %461 = vector.broadcast %cst_201 : f32 to vector<8x128xf32>
    %462 = arith.mulf %458, %461 : vector<8x128xf32>
    %463 = arith.select %460, %458, %462 : vector<8x128xi1>, vector<8x128xf32>
    %cst_202 = arith.constant 0.000000e+00 : f32
    %464 = vector.broadcast %cst_202 : f32 to vector<8x128xf32>
    %465 = arith.subf %464, %463 : vector<8x128xf32>
    %cst_203 = arith.constant 0.000000e+00 : f32
    %cst_204 = arith.constant 6.000000e+00 : f32
    %466 = vector.broadcast %cst_203 : f32 to vector<8x128xf32>
    %467 = arith.maximumf %466, %465 : vector<8x128xf32>
    %468 = vector.broadcast %cst_204 : f32 to vector<8x128xf32>
    %469 = arith.minimumf %468, %467 : vector<8x128xf32>
    %c0_205 = arith.constant 0 : index
    %c4_206 = arith.constant 4 : index
    %c0_207 = arith.constant 0 : index
    %c0_208 = arith.constant 0 : index
    %470 = vector.load %arg3[%c0_205, %c4_206, %c0_207, %c0_208] : memref<1x9x8x128xf32, #tpu.memory_space<vmem>>, vector<1x1x8x128xf32>
    %471 = vector.shape_cast %470 : vector<1x1x8x128xf32> to vector<8x128xf32>
    %472 = vector.shape_cast %469 : vector<8x128xf32> to vector<1x1x8x128xf32>
    tpu.vector_store %arg3[%c0_205, %c4_206, %c0_207, %c0_208], %472 {strides = array<i32>} : memref<1x9x8x128xf32, #tpu.memory_space<vmem>>, vector<1x1x8x128xf32>,
    %c7_209 = arith.constant 7 : index
    %c0_210 = arith.constant 0 : index
    %473 = vector.load %arg2[%c7_209, %c0_210] : memref<126x128xf32, #tpu.memory_space<vmem>>, vector<1x128xf32>
    %474 = vector.broadcast %473 : vector<1x128xf32> to vector<8x128xf32>
    %475 = arith.mulf %1, %474 : vector<8x128xf32>
    %476 = arith.addf %42, %475 : vector<8x128xf32>
    %c32 = arith.constant 32 : index
    %c0_211 = arith.constant 0 : index
    %477 = vector.load %arg2[%c32, %c0_211] : memref<126x128xf32, #tpu.memory_space<vmem>>, vector<1x128xf32>
    %478 = vector.broadcast %477 : vector<1x128xf32> to vector<8x128xf32>
    %479 = arith.mulf %3, %478 : vector<8x128xf32>
    %480 = arith.addf %476, %479 : vector<8x128xf32>
    %c57 = arith.constant 57 : index
    %c0_212 = arith.constant 0 : index
    %481 = vector.load %arg2[%c57, %c0_212] : memref<126x128xf32, #tpu.memory_space<vmem>>, vector<1x128xf32>
    %482 = vector.broadcast %481 : vector<1x128xf32> to vector<8x128xf32>
    %483 = arith.mulf %5, %482 : vector<8x128xf32>
    %484 = arith.addf %480, %483 : vector<8x128xf32>
    %c82 = arith.constant 82 : index
    %c0_213 = arith.constant 0 : index
    %485 = vector.load %arg2[%c82, %c0_213] : memref<126x128xf32, #tpu.memory_space<vmem>>, vector<1x128xf32>
    %486 = vector.broadcast %485 : vector<1x128xf32> to vector<8x128xf32>
    %487 = arith.mulf %7, %486 : vector<8x128xf32>
    %488 = arith.addf %484, %487 : vector<8x128xf32>
    %c107 = arith.constant 107 : index
    %c0_214 = arith.constant 0 : index
    %489 = vector.load %arg2[%c107, %c0_214] : memref<126x128xf32, #tpu.memory_space<vmem>>, vector<1x128xf32>
    %490 = vector.broadcast %489 : vector<1x128xf32> to vector<8x128xf32>
    %491 = arith.mulf %9, %490 : vector<8x128xf32>
    %492 = arith.addf %488, %491 : vector<8x128xf32>
    %c22 = arith.constant 22 : index
    %c0_215 = arith.constant 0 : index
    %493 = vector.load %arg2[%c22, %c0_215] : memref<126x128xf32, #tpu.memory_space<vmem>>, vector<1x128xf32>
    %494 = vector.broadcast %493 : vector<1x128xf32> to vector<8x128xf32>
    %495 = arith.mulf %21, %494 : vector<8x128xf32>
    %496 = arith.addf %492, %495 : vector<8x128xf32>
    %c47 = arith.constant 47 : index
    %c0_216 = arith.constant 0 : index
    %497 = vector.load %arg2[%c47, %c0_216] : memref<126x128xf32, #tpu.memory_space<vmem>>, vector<1x128xf32>
    %498 = vector.broadcast %497 : vector<1x128xf32> to vector<8x128xf32>
    %499 = arith.mulf %23, %498 : vector<8x128xf32>
    %500 = arith.addf %496, %499 : vector<8x128xf32>
    %c72 = arith.constant 72 : index
    %c0_217 = arith.constant 0 : index
    %501 = vector.load %arg2[%c72, %c0_217] : memref<126x128xf32, #tpu.memory_space<vmem>>, vector<1x128xf32>
    %502 = vector.broadcast %501 : vector<1x128xf32> to vector<8x128xf32>
    %503 = arith.mulf %25, %502 : vector<8x128xf32>
    %504 = arith.addf %500, %503 : vector<8x128xf32>
    %c97 = arith.constant 97 : index
    %c0_218 = arith.constant 0 : index
    %505 = vector.load %arg2[%c97, %c0_218] : memref<126x128xf32, #tpu.memory_space<vmem>>, vector<1x128xf32>
    %506 = vector.broadcast %505 : vector<1x128xf32> to vector<8x128xf32>
    %507 = arith.mulf %27, %506 : vector<8x128xf32>
    %508 = arith.addf %504, %507 : vector<8x128xf32>
    %c122 = arith.constant 122 : index
    %c0_219 = arith.constant 0 : index
    %509 = vector.load %arg2[%c122, %c0_219] : memref<126x128xf32, #tpu.memory_space<vmem>>, vector<1x128xf32>
    %510 = vector.broadcast %509 : vector<1x128xf32> to vector<8x128xf32>
    %511 = arith.mulf %29, %510 : vector<8x128xf32>
    %512 = arith.addf %508, %511 : vector<8x128xf32>
    %cst_220 = arith.constant 0.000000e+00 : f32
    %513 = vector.broadcast %cst_220 : f32 to vector<8x128xf32>
    %514 = arith.cmpf ogt, %512, %513 : vector<8x128xf32>
    %cst_221 = arith.constant -2.089270e-01 : f32
    %515 = vector.broadcast %cst_221 : f32 to vector<8x128xf32>
    %516 = arith.mulf %512, %515 : vector<8x128xf32>
    %517 = arith.select %514, %512, %516 : vector<8x128xi1>, vector<8x128xf32>
    %cst_222 = arith.constant 0.000000e+00 : f32
    %518 = vector.broadcast %cst_222 : f32 to vector<8x128xf32>
    %519 = arith.subf %518, %517 : vector<8x128xf32>
    %cst_223 = arith.constant 0.000000e+00 : f32
    %cst_224 = arith.constant 6.000000e+00 : f32
    %520 = vector.broadcast %cst_223 : f32 to vector<8x128xf32>
    %521 = arith.maximumf %520, %519 : vector<8x128xf32>
    %522 = vector.broadcast %cst_224 : f32 to vector<8x128xf32>
    %523 = arith.minimumf %522, %521 : vector<8x128xf32>
    %c0_225 = arith.constant 0 : index
    %c5_226 = arith.constant 5 : index
    %c0_227 = arith.constant 0 : index
    %c0_228 = arith.constant 0 : index
    %524 = vector.load %arg3[%c0_225, %c5_226, %c0_227, %c0_228] : memref<1x9x8x128xf32, #tpu.memory_space<vmem>>, vector<1x1x8x128xf32>
    %525 = vector.shape_cast %524 : vector<1x1x8x128xf32> to vector<8x128xf32>
    %526 = vector.shape_cast %523 : vector<8x128xf32> to vector<1x1x8x128xf32>
    tpu.vector_store %arg3[%c0_225, %c5_226, %c0_227, %c0_228], %526 {strides = array<i32>} : memref<1x9x8x128xf32, #tpu.memory_space<vmem>>, vector<1x1x8x128xf32>,
    %c10_229 = arith.constant 10 : index
    %c0_230 = arith.constant 0 : index
    %527 = vector.load %arg2[%c10_229, %c0_230] : memref<126x128xf32, #tpu.memory_space<vmem>>, vector<1x128xf32>
    %528 = vector.broadcast %527 : vector<1x128xf32> to vector<8x128xf32>
    %529 = arith.mulf %1, %528 : vector<8x128xf32>
    %530 = arith.addf %42, %529 : vector<8x128xf32>
    %c35 = arith.constant 35 : index
    %c0_231 = arith.constant 0 : index
    %531 = vector.load %arg2[%c35, %c0_231] : memref<126x128xf32, #tpu.memory_space<vmem>>, vector<1x128xf32>
    %532 = vector.broadcast %531 : vector<1x128xf32> to vector<8x128xf32>
    %533 = arith.mulf %3, %532 : vector<8x128xf32>
    %534 = arith.addf %530, %533 : vector<8x128xf32>
    %c60 = arith.constant 60 : index
    %c0_232 = arith.constant 0 : index
    %535 = vector.load %arg2[%c60, %c0_232] : memref<126x128xf32, #tpu.memory_space<vmem>>, vector<1x128xf32>
    %536 = vector.broadcast %535 : vector<1x128xf32> to vector<8x128xf32>
    %537 = arith.mulf %5, %536 : vector<8x128xf32>
    %538 = arith.addf %534, %537 : vector<8x128xf32>
    %c85 = arith.constant 85 : index
    %c0_233 = arith.constant 0 : index
    %539 = vector.load %arg2[%c85, %c0_233] : memref<126x128xf32, #tpu.memory_space<vmem>>, vector<1x128xf32>
    %540 = vector.broadcast %539 : vector<1x128xf32> to vector<8x128xf32>
    %541 = arith.mulf %7, %540 : vector<8x128xf32>
    %542 = arith.addf %538, %541 : vector<8x128xf32>
    %c110 = arith.constant 110 : index
    %c0_234 = arith.constant 0 : index
    %543 = vector.load %arg2[%c110, %c0_234] : memref<126x128xf32, #tpu.memory_space<vmem>>, vector<1x128xf32>
    %544 = vector.broadcast %543 : vector<1x128xf32> to vector<8x128xf32>
    %545 = arith.mulf %9, %544 : vector<8x128xf32>
    %546 = arith.addf %542, %545 : vector<8x128xf32>
    %c13_235 = arith.constant 13 : index
    %c0_236 = arith.constant 0 : index
    %547 = vector.load %arg2[%c13_235, %c0_236] : memref<126x128xf32, #tpu.memory_space<vmem>>, vector<1x128xf32>
    %548 = vector.broadcast %547 : vector<1x128xf32> to vector<8x128xf32>
    %549 = arith.mulf %11, %548 : vector<8x128xf32>
    %550 = arith.addf %546, %549 : vector<8x128xf32>
    %c38 = arith.constant 38 : index
    %c0_237 = arith.constant 0 : index
    %551 = vector.load %arg2[%c38, %c0_237] : memref<126x128xf32, #tpu.memory_space<vmem>>, vector<1x128xf32>
    %552 = vector.broadcast %551 : vector<1x128xf32> to vector<8x128xf32>
    %553 = arith.mulf %13, %552 : vector<8x128xf32>
    %554 = arith.addf %550, %553 : vector<8x128xf32>
    %c63 = arith.constant 63 : index
    %c0_238 = arith.constant 0 : index
    %555 = vector.load %arg2[%c63, %c0_238] : memref<126x128xf32, #tpu.memory_space<vmem>>, vector<1x128xf32>
    %556 = vector.broadcast %555 : vector<1x128xf32> to vector<8x128xf32>
    %557 = arith.mulf %15, %556 : vector<8x128xf32>
    %558 = arith.addf %554, %557 : vector<8x128xf32>
    %c88 = arith.constant 88 : index
    %c0_239 = arith.constant 0 : index
    %559 = vector.load %arg2[%c88, %c0_239] : memref<126x128xf32, #tpu.memory_space<vmem>>, vector<1x128xf32>
    %560 = vector.broadcast %559 : vector<1x128xf32> to vector<8x128xf32>
    %561 = arith.mulf %17, %560 : vector<8x128xf32>
    %562 = arith.addf %558, %561 : vector<8x128xf32>
    %c113 = arith.constant 113 : index
    %c0_240 = arith.constant 0 : index
    %563 = vector.load %arg2[%c113, %c0_240] : memref<126x128xf32, #tpu.memory_space<vmem>>, vector<1x128xf32>
    %564 = vector.broadcast %563 : vector<1x128xf32> to vector<8x128xf32>
    %565 = arith.mulf %19, %564 : vector<8x128xf32>
    %566 = arith.addf %562, %565 : vector<8x128xf32>
    %cst_241 = arith.constant 0.000000e+00 : f32
    %567 = vector.broadcast %cst_241 : f32 to vector<8x128xf32>
    %568 = arith.cmpf ogt, %566, %567 : vector<8x128xf32>
    %cst_242 = arith.constant -2.089270e-01 : f32
    %569 = vector.broadcast %cst_242 : f32 to vector<8x128xf32>
    %570 = arith.mulf %566, %569 : vector<8x128xf32>
    %571 = arith.select %568, %566, %570 : vector<8x128xi1>, vector<8x128xf32>
    %cst_243 = arith.constant 0.000000e+00 : f32
    %572 = vector.broadcast %cst_243 : f32 to vector<8x128xf32>
    %573 = arith.subf %572, %571 : vector<8x128xf32>
    %cst_244 = arith.constant 0.000000e+00 : f32
    %cst_245 = arith.constant 6.000000e+00 : f32
    %574 = vector.broadcast %cst_244 : f32 to vector<8x128xf32>
    %575 = arith.maximumf %574, %573 : vector<8x128xf32>
    %576 = vector.broadcast %cst_245 : f32 to vector<8x128xf32>
    %577 = arith.minimumf %576, %575 : vector<8x128xf32>
    %c0_246 = arith.constant 0 : index
    %c6_247 = arith.constant 6 : index
    %c0_248 = arith.constant 0 : index
    %c0_249 = arith.constant 0 : index
    %578 = vector.load %arg3[%c0_246, %c6_247, %c0_248, %c0_249] : memref<1x9x8x128xf32, #tpu.memory_space<vmem>>, vector<1x1x8x128xf32>
    %579 = vector.shape_cast %578 : vector<1x1x8x128xf32> to vector<8x128xf32>
    %580 = vector.shape_cast %577 : vector<8x128xf32> to vector<1x1x8x128xf32>
    tpu.vector_store %arg3[%c0_246, %c6_247, %c0_248, %c0_249], %580 {strides = array<i32>} : memref<1x9x8x128xf32, #tpu.memory_space<vmem>>, vector<1x1x8x128xf32>,
    %c11_250 = arith.constant 11 : index
    %c0_251 = arith.constant 0 : index
    %581 = vector.load %arg2[%c11_250, %c0_251] : memref<126x128xf32, #tpu.memory_space<vmem>>, vector<1x128xf32>
    %582 = vector.broadcast %581 : vector<1x128xf32> to vector<8x128xf32>
    %583 = arith.mulf %1, %582 : vector<8x128xf32>
    %584 = arith.addf %42, %583 : vector<8x128xf32>
    %c36 = arith.constant 36 : index
    %c0_252 = arith.constant 0 : index
    %585 = vector.load %arg2[%c36, %c0_252] : memref<126x128xf32, #tpu.memory_space<vmem>>, vector<1x128xf32>
    %586 = vector.broadcast %585 : vector<1x128xf32> to vector<8x128xf32>
    %587 = arith.mulf %3, %586 : vector<8x128xf32>
    %588 = arith.addf %584, %587 : vector<8x128xf32>
    %c61 = arith.constant 61 : index
    %c0_253 = arith.constant 0 : index
    %589 = vector.load %arg2[%c61, %c0_253] : memref<126x128xf32, #tpu.memory_space<vmem>>, vector<1x128xf32>
    %590 = vector.broadcast %589 : vector<1x128xf32> to vector<8x128xf32>
    %591 = arith.mulf %5, %590 : vector<8x128xf32>
    %592 = arith.addf %588, %591 : vector<8x128xf32>
    %c86 = arith.constant 86 : index
    %c0_254 = arith.constant 0 : index
    %593 = vector.load %arg2[%c86, %c0_254] : memref<126x128xf32, #tpu.memory_space<vmem>>, vector<1x128xf32>
    %594 = vector.broadcast %593 : vector<1x128xf32> to vector<8x128xf32>
    %595 = arith.mulf %7, %594 : vector<8x128xf32>
    %596 = arith.addf %592, %595 : vector<8x128xf32>
    %c111 = arith.constant 111 : index
    %c0_255 = arith.constant 0 : index
    %597 = vector.load %arg2[%c111, %c0_255] : memref<126x128xf32, #tpu.memory_space<vmem>>, vector<1x128xf32>
    %598 = vector.broadcast %597 : vector<1x128xf32> to vector<8x128xf32>
    %599 = arith.mulf %9, %598 : vector<8x128xf32>
    %600 = arith.addf %596, %599 : vector<8x128xf32>
    %c14_256 = arith.constant 14 : index
    %c0_257 = arith.constant 0 : index
    %601 = vector.load %arg2[%c14_256, %c0_257] : memref<126x128xf32, #tpu.memory_space<vmem>>, vector<1x128xf32>
    %602 = vector.broadcast %601 : vector<1x128xf32> to vector<8x128xf32>
    %603 = arith.mulf %11, %602 : vector<8x128xf32>
    %604 = arith.addf %600, %603 : vector<8x128xf32>
    %c39 = arith.constant 39 : index
    %c0_258 = arith.constant 0 : index
    %605 = vector.load %arg2[%c39, %c0_258] : memref<126x128xf32, #tpu.memory_space<vmem>>, vector<1x128xf32>
    %606 = vector.broadcast %605 : vector<1x128xf32> to vector<8x128xf32>
    %607 = arith.mulf %13, %606 : vector<8x128xf32>
    %608 = arith.addf %604, %607 : vector<8x128xf32>
    %c64 = arith.constant 64 : index
    %c0_259 = arith.constant 0 : index
    %609 = vector.load %arg2[%c64, %c0_259] : memref<126x128xf32, #tpu.memory_space<vmem>>, vector<1x128xf32>
    %610 = vector.broadcast %609 : vector<1x128xf32> to vector<8x128xf32>
    %611 = arith.mulf %15, %610 : vector<8x128xf32>
    %612 = arith.addf %608, %611 : vector<8x128xf32>
    %c89 = arith.constant 89 : index
    %c0_260 = arith.constant 0 : index
    %613 = vector.load %arg2[%c89, %c0_260] : memref<126x128xf32, #tpu.memory_space<vmem>>, vector<1x128xf32>
    %614 = vector.broadcast %613 : vector<1x128xf32> to vector<8x128xf32>
    %615 = arith.mulf %17, %614 : vector<8x128xf32>
    %616 = arith.addf %612, %615 : vector<8x128xf32>
    %c114 = arith.constant 114 : index
    %c0_261 = arith.constant 0 : index
    %617 = vector.load %arg2[%c114, %c0_261] : memref<126x128xf32, #tpu.memory_space<vmem>>, vector<1x128xf32>
    %618 = vector.broadcast %617 : vector<1x128xf32> to vector<8x128xf32>
    %619 = arith.mulf %19, %618 : vector<8x128xf32>
    %620 = arith.addf %616, %619 : vector<8x128xf32>
    %cst_262 = arith.constant 0.000000e+00 : f32
    %621 = vector.broadcast %cst_262 : f32 to vector<8x128xf32>
    %622 = arith.cmpf ogt, %620, %621 : vector<8x128xf32>
    %cst_263 = arith.constant -2.089270e-01 : f32
    %623 = vector.broadcast %cst_263 : f32 to vector<8x128xf32>
    %624 = arith.mulf %620, %623 : vector<8x128xf32>
    %625 = arith.select %622, %620, %624 : vector<8x128xi1>, vector<8x128xf32>
    %cst_264 = arith.constant 0.000000e+00 : f32
    %626 = vector.broadcast %cst_264 : f32 to vector<8x128xf32>
    %627 = arith.subf %626, %625 : vector<8x128xf32>
    %cst_265 = arith.constant 0.000000e+00 : f32
    %cst_266 = arith.constant 6.000000e+00 : f32
    %628 = vector.broadcast %cst_265 : f32 to vector<8x128xf32>
    %629 = arith.maximumf %628, %627 : vector<8x128xf32>
    %630 = vector.broadcast %cst_266 : f32 to vector<8x128xf32>
    %631 = arith.minimumf %630, %629 : vector<8x128xf32>
    %c0_267 = arith.constant 0 : index
    %c7_268 = arith.constant 7 : index
    %c0_269 = arith.constant 0 : index
    %c0_270 = arith.constant 0 : index
    %632 = vector.load %arg3[%c0_267, %c7_268, %c0_269, %c0_270] : memref<1x9x8x128xf32, #tpu.memory_space<vmem>>, vector<1x1x8x128xf32>
    %633 = vector.shape_cast %632 : vector<1x1x8x128xf32> to vector<8x128xf32>
    %634 = vector.shape_cast %631 : vector<8x128xf32> to vector<1x1x8x128xf32>
    tpu.vector_store %arg3[%c0_267, %c7_268, %c0_269, %c0_270], %634 {strides = array<i32>} : memref<1x9x8x128xf32, #tpu.memory_space<vmem>>, vector<1x1x8x128xf32>,
    %c12_271 = arith.constant 12 : index
    %c0_272 = arith.constant 0 : index
    %635 = vector.load %arg2[%c12_271, %c0_272] : memref<126x128xf32, #tpu.memory_space<vmem>>, vector<1x128xf32>
    %636 = vector.broadcast %635 : vector<1x128xf32> to vector<8x128xf32>
    %637 = arith.mulf %1, %636 : vector<8x128xf32>
    %638 = arith.addf %42, %637 : vector<8x128xf32>
    %c37 = arith.constant 37 : index
    %c0_273 = arith.constant 0 : index
    %639 = vector.load %arg2[%c37, %c0_273] : memref<126x128xf32, #tpu.memory_space<vmem>>, vector<1x128xf32>
    %640 = vector.broadcast %639 : vector<1x128xf32> to vector<8x128xf32>
    %641 = arith.mulf %3, %640 : vector<8x128xf32>
    %642 = arith.addf %638, %641 : vector<8x128xf32>
    %c62 = arith.constant 62 : index
    %c0_274 = arith.constant 0 : index
    %643 = vector.load %arg2[%c62, %c0_274] : memref<126x128xf32, #tpu.memory_space<vmem>>, vector<1x128xf32>
    %644 = vector.broadcast %643 : vector<1x128xf32> to vector<8x128xf32>
    %645 = arith.mulf %5, %644 : vector<8x128xf32>
    %646 = arith.addf %642, %645 : vector<8x128xf32>
    %c87 = arith.constant 87 : index
    %c0_275 = arith.constant 0 : index
    %647 = vector.load %arg2[%c87, %c0_275] : memref<126x128xf32, #tpu.memory_space<vmem>>, vector<1x128xf32>
    %648 = vector.broadcast %647 : vector<1x128xf32> to vector<8x128xf32>
    %649 = arith.mulf %7, %648 : vector<8x128xf32>
    %650 = arith.addf %646, %649 : vector<8x128xf32>
    %c112 = arith.constant 112 : index
    %c0_276 = arith.constant 0 : index
    %651 = vector.load %arg2[%c112, %c0_276] : memref<126x128xf32, #tpu.memory_space<vmem>>, vector<1x128xf32>
    %652 = vector.broadcast %651 : vector<1x128xf32> to vector<8x128xf32>
    %653 = arith.mulf %9, %652 : vector<8x128xf32>
    %654 = arith.addf %650, %653 : vector<8x128xf32>
    %cst_277 = arith.constant 0.000000e+00 : f32
    %655 = vector.broadcast %cst_277 : f32 to vector<8x128xf32>
    %656 = arith.cmpf ogt, %654, %655 : vector<8x128xf32>
    %cst_278 = arith.constant -2.089270e-01 : f32
    %657 = vector.broadcast %cst_278 : f32 to vector<8x128xf32>
    %658 = arith.mulf %654, %657 : vector<8x128xf32>
    %659 = arith.select %656, %654, %658 : vector<8x128xi1>, vector<8x128xf32>
    %cst_279 = arith.constant 0.000000e+00 : f32
    %660 = vector.broadcast %cst_279 : f32 to vector<8x128xf32>
    %661 = arith.subf %660, %659 : vector<8x128xf32>
    %cst_280 = arith.constant 0.000000e+00 : f32
    %cst_281 = arith.constant 6.000000e+00 : f32
    %662 = vector.broadcast %cst_280 : f32 to vector<8x128xf32>
    %663 = arith.maximumf %662, %661 : vector<8x128xf32>
    %664 = vector.broadcast %cst_281 : f32 to vector<8x128xf32>
    %665 = arith.minimumf %664, %663 : vector<8x128xf32>
    %c0_282 = arith.constant 0 : index
    %c8_283 = arith.constant 8 : index
    %c0_284 = arith.constant 0 : index
    %c0_285 = arith.constant 0 : index
    %666 = vector.load %arg3[%c0_282, %c8_283, %c0_284, %c0_285] : memref<1x9x8x128xf32, #tpu.memory_space<vmem>>, vector<1x1x8x128xf32>
    %667 = vector.shape_cast %666 : vector<1x1x8x128xf32> to vector<8x128xf32>
    %668 = vector.shape_cast %665 : vector<8x128xf32> to vector<1x1x8x128xf32>
    tpu.vector_store %arg3[%c0_282, %c8_283, %c0_284, %c0_285], %668 {strides = array<i32>} : memref<1x9x8x128xf32, #tpu.memory_space<vmem>>, vector<1x1x8x128xf32>,
    return
  }
  func.func @transform_0(%arg0: i32) -> (i32, i32, i32, i32) {
    %c0_i32 = arith.constant 0 : i32
    %c0_i32_0 = arith.constant 0 : i32
    %c0_i32_1 = arith.constant 0 : i32
    %c0_i32_2 = arith.constant 0 : i32
    return %arg0, %c0_i32, %c0_i32_0, %c0_i32_1 : i32, i32, i32, i32
  }
  func.func @transform_1(%arg0: i32) -> (i32, i32) {
    %c0_i32 = arith.constant 0 : i32
    %c0_i32_0 = arith.constant 0 : i32
    %c0_i32_1 = arith.constant 0 : i32
    return %c0_i32, %c0_i32_0 : i32, i32
  }
  func.func @transform_2(%arg0: i32) -> (i32, i32, i32, i32) {
    %c0_i32 = arith.constant 0 : i32
    %c0_i32_0 = arith.constant 0 : i32
    %c0_i32_1 = arith.constant 0 : i32
    %c0_i32_2 = arith.constant 0 : i32
    return %arg0, %c0_i32, %c0_i32_0, %c0_i32_1 : i32, i32, i32, i32
  }
}

</mosaic_0001>

<llo_original>
// kernel: conv_transpose_model.1
$region0: #{conv_transpose_model.1}
  #allocation0 [shape = 'u32[]', space=smem, size = 0x4, offset = 0x4, fixed_abs, tag = 'smem constant byte address 0x4 - core index']
  #allocation1 [shape = 'u32[72,128]{1,0:T(1,128)}', space=vmem, size = 0x9000, scoped, tag = 'internal scratch']
  %s0 = inlined_call_operand.vmem [shape: f32[1,20,8,128], index: 0, kind: input, shape index: {}]
  %s1 = inlined_call_operand.vmem [shape: f32[126,128], index: 1, kind: input, shape index: {}]
  %s2 = inlined_call_operand.vmem [shape: f32[1,9,8,128], index: 2, kind: output, shape index: {}]
  %s3 = sld [smem:[#allocation0]]
  $region18: #{conv_transpose_model.1} parent=0
    _
  %s5 = ssub.s32 1, %s3
  %s6 = scalar_select 0, %s5, %s3
  // Predicated region
  $region2: #{conv_transpose_model.1} parent=0 // pred_check
    _
  $region3: #{conv_transpose_model.1} parent=0 // pred_check_branch
    %8 = sbr.rel (0) target = $region5
  $region4: #{conv_transpose_model.1} parent=0 // pred_region
    _
  $region5: #{conv_transpose_model.1} parent=0 // pred_fallthru
    _
  // Predicated region
  $region6: #{conv_transpose_model.1} parent=0 // pred_check
    _
  $region7: #{conv_transpose_model.1} parent=0 // pred_check_branch
    %10 = sbr.rel (0) target = $region9
  $region8: #{conv_transpose_model.1} parent=0 // pred_region
    _
  $region9: #{conv_transpose_model.1} parent=0 // pred_fallthru
    _
  %v11 = vld [vmem:[%s0] sm:$0xff]
  %s12 = scalar_lea.vmem %s0, 8
  %v13 = vld [vmem:[%s12] sm:$0xff]
  %s14 = scalar_lea.vmem %s0, 16
  %v15 = vld [vmem:[%s14] sm:$0xff]
  %s16 = scalar_lea.vmem %s0, 24
  %v17 = vld [vmem:[%s16] sm:$0xff]
  %s18 = scalar_lea.vmem %s0, 32
  %v19 = vld [vmem:[%s18] sm:$0xff]
  %s20 = scalar_lea.vmem %s0, 40
  %v21 = vld [vmem:[%s20] sm:$0xff]
  %s22 = scalar_lea.vmem %s0, 48
  %v23 = vld [vmem:[%s22] sm:$0xff]
  %s24 = scalar_lea.vmem %s0, 56
  %v25 = vld [vmem:[%s24] sm:$0xff]
  %s26 = scalar_lea.vmem %s0, 64
  %v27 = vld [vmem:[%s26] sm:$0xff]
  %s28 = scalar_lea.vmem %s0, 72
  %v29 = vld [vmem:[%s28] sm:$0xff]
  %s30 = scalar_lea.vmem %s0, 80
  %v31 = vld [vmem:[%s30] sm:$0xff]
  %s32 = scalar_lea.vmem %s0, 88
  %v33 = vld [vmem:[%s32] sm:$0xff]
  %s34 = scalar_lea.vmem %s0, 96
  %v35 = vld [vmem:[%s34] sm:$0xff]
  %s36 = scalar_lea.vmem %s0, 104
  %v37 = vld [vmem:[%s36] sm:$0xff]
  %s38 = scalar_lea.vmem %s0, 112
  %v39 = vld [vmem:[%s38] sm:$0xff]
  %s40 = scalar_lea.vmem %s0, 120
  %v41 = vld [vmem:[%s40] sm:$0xff]
  %s42 = scalar_lea.vmem %s0, 128
  %v43 = vld [vmem:[%s42] sm:$0xff]
  %s44 = scalar_lea.vmem %s0, 136
  %v45 = vld [vmem:[%s44] sm:$0xff]
  %s46 = scalar_lea.vmem %s0, 144
  %v47 = vld [vmem:[%s46] sm:$0xff]
  %s48 = scalar_lea.vmem %s0, 152
  %v49 = vld [vmem:[%s48] sm:$0xff]
  %v50 = vld [vmem:[%s1 + $0x7d] sm:$0x1]
  %v51 = vperm.slane %v50, 0
  %v52 = vld [vmem:[%s1] sm:$0x1]
  %v53 = vperm.slane %v52, 0
  %v54 = vmul.f32 %v11, %v53
  %v55 = vadd.f32 %v51, %v54
  %v56 = vld [vmem:[%s1 + $0x19] sm:$0x1]
  %v57 = vperm.slane %v56, 0
  %v58 = vmul.f32 %v13, %v57
  %v59 = vadd.f32 %v55, %v58
  %v60 = vld [vmem:[%s1 + $0x32] sm:$0x1]
  %v61 = vperm.slane %v60, 0
  %v62 = vmul.f32 %v15, %v61
  %v63 = vadd.f32 %v59, %v62
  %v64 = vld [vmem:[%s1 + $0x4b] sm:$0x1]
  %v65 = vperm.slane %v64, 0
  %v66 = vmul.f32 %v17, %v65
  %v67 = vadd.f32 %v63, %v66
  %v68 = vld [vmem:[%s1 + $0x64] sm:$0x1]
  %v69 = vperm.slane %v68, 0
  %v70 = vmul.f32 %v19, %v69
  %v71 = vadd.f32 %v67, %v70
  %v72 = vld [vmem:[%s1 + $0x3] sm:$0x1]
  %v73 = vperm.slane %v72, 0
  %v74 = vmul.f32 %v21, %v73
  %v75 = vadd.f32 %v71, %v74
  %v76 = vld [vmem:[%s1 + $0x1c] sm:$0x1]
  %v77 = vperm.slane %v76, 0
  %v78 = vmul.f32 %v23, %v77
  %v79 = vadd.f32 %v75, %v78
  %v80 = vld [vmem:[%s1 + $0x35] sm:$0x1]
  %v81 = vperm.slane %v80, 0
  %v82 = vmul.f32 %v25, %v81
  %v83 = vadd.f32 %v79, %v82
  %v84 = vld [vmem:[%s1 + $0x4e] sm:$0x1]
  %v85 = vperm.slane %v84, 0
  %v86 = vmul.f32 %v27, %v85
  %v87 = vadd.f32 %v83, %v86
  %v88 = vld [vmem:[%s1 + $0x67] sm:$0x1]
  %v89 = vperm.slane %v88, 0
  %v90 = vmul.f32 %v29, %v89
  %v91 = vadd.f32 %v87, %v90
  %v92 = vld [vmem:[%s1 + $0xf] sm:$0x1]
  %v93 = vperm.slane %v92, 0
  %v94 = vmul.f32 %v31, %v93
  %v95 = vadd.f32 %v91, %v94
  %v96 = vld [vmem:[%s1 + $0x28] sm:$0x1]
  %v97 = vperm.slane %v96, 0
  %v98 = vmul.f32 %v33, %v97
  %v99 = vadd.f32 %v95, %v98
  %v100 = vld [vmem:[%s1 + $0x41] sm:$0x1]
  %v101 = vperm.slane %v100, 0
  %v102 = vmul.f32 %v35, %v101
  %v103 = vadd.f32 %v99, %v102
  %v104 = vld [vmem:[%s1 + $0x5a] sm:$0x1]
  %v105 = vperm.slane %v104, 0
  %v106 = vmul.f32 %v37, %v105
  %v107 = vadd.f32 %v103, %v106
  %v108 = vld [vmem:[%s1 + $0x73] sm:$0x1]
  %v109 = vperm.slane %v108, 0
  %v110 = vmul.f32 %v39, %v109
  %v111 = vadd.f32 %v107, %v110
  %v112 = vld [vmem:[%s1 + $0x12] sm:$0x1]
  %v113 = vperm.slane %v112, 0
  %v114 = vmul.f32 %v41, %v113
  %v115 = vadd.f32 %v111, %v114
  %v116 = vld [vmem:[%s1 + $0x2b] sm:$0x1]
  %v117 = vperm.slane %v116, 0
  %v118 = vmul.f32 %v43, %v117
  %v119 = vadd.f32 %v115, %v118
  %v120 = vld [vmem:[%s1 + $0x44] sm:$0x1]
  %v121 = vperm.slane %v120, 0
  %v122 = vmul.f32 %v45, %v121
  %v123 = vadd.f32 %v119, %v122
  %v124 = vld [vmem:[%s1 + $0x5d] sm:$0x1]
  %v125 = vperm.slane %v124, 0
  %v126 = vmul.f32 %v47, %v125
  %v127 = vadd.f32 %v123, %v126
  %v128 = vld [vmem:[%s1 + $0x76] sm:$0x1]
  %v129 = vperm.slane %v128, 0
  %v130 = vmul.f32 %v49, %v129
  %v131 = vadd.f32 %v127, %v130
  %vm132 = vcmp.gt.f32.partialorder %v131, 0.0
  %v133 = vmul.f32 %v131, -0.208927
  %v134 = vsel %vm132, %v131, %v133
  %v135 = vsub.f32 0.0, %v134
  %v136 = vmax.f32 %v135, 0.0
  %v137 = vmin.f32 %v136, 6.0
  %138 = vst [vmem:[%s2] sm:$0xff] %v137
  %v139 = vld [vmem:[%s1 + $0x1] sm:$0x1]
  %v140 = vperm.slane %v139, 0
  %v141 = vmul.f32 %v11, %v140
  %v142 = vadd.f32 %v51, %v141
  %v143 = vld [vmem:[%s1 + $0x1a] sm:$0x1]
  %v144 = vperm.slane %v143, 0
  %v145 = vmul.f32 %v13, %v144
  %v146 = vadd.f32 %v142, %v145
  %v147 = vld [vmem:[%s1 + $0x33] sm:$0x1]
  %v148 = vperm.slane %v147, 0
  %v149 = vmul.f32 %v15, %v148
  %v150 = vadd.f32 %v146, %v149
  %v151 = vld [vmem:[%s1 + $0x4c] sm:$0x1]
  %v152 = vperm.slane %v151, 0
  %v153 = vmul.f32 %v17, %v152
  %v154 = vadd.f32 %v150, %v153
  %v155 = vld [vmem:[%s1 + $0x65] sm:$0x1]
  %v156 = vperm.slane %v155, 0
  %v157 = vmul.f32 %v19, %v156
  %v158 = vadd.f32 %v154, %v157
  %v159 = vld [vmem:[%s1 + $0x4] sm:$0x1]
  %v160 = vperm.slane %v159, 0
  %v161 = vmul.f32 %v21, %v160
  %v162 = vadd.f32 %v158, %v161
  %v163 = vld [vmem:[%s1 + $0x1d] sm:$0x1]
  %v164 = vperm.slane %v163, 0
  %v165 = vmul.f32 %v23, %v164
  %v166 = vadd.f32 %v162, %v165
  %v167 = vld [vmem:[%s1 + $0x36] sm:$0x1]
  %v168 = vperm.slane %v167, 0
  %v169 = vmul.f32 %v25, %v168
  %v170 = vadd.f32 %v166, %v169
  %v171 = vld [vmem:[%s1 + $0x4f] sm:$0x1]
  %v172 = vperm.slane %v171, 0
  %v173 = vmul.f32 %v27, %v172
  %v174 = vadd.f32 %v170, %v173
  %v175 = vld [vmem:[%s1 + $0x68] sm:$0x1]
  %v176 = vperm.slane %v175, 0
  %v177 = vmul.f32 %v29, %v176
  %v178 = vadd.f32 %v174, %v177
  %v179 = vld [vmem:[%s1 + $0x10] sm:$0x1]
  %v180 = vperm.slane %v179, 0
  %v181 = vmul.f32 %v31, %v180
  %v182 = vadd.f32 %v178, %v181
  %v183 = vld [vmem:[%s1 + $0x29] sm:$0x1]
  %v184 = vperm.slane %v183, 0
  %v185 = vmul.f32 %v33, %v184
  %v186 = vadd.f32 %v182, %v185
  %v187 = vld [vmem:[%s1 + $0x42] sm:$0x1]
  %v188 = vperm.slane %v187, 0
  %v189 = vmul.f32 %v35, %v188
  %v190 = vadd.f32 %v186, %v189
  %v191 = vld [vmem:[%s1 + $0x5b] sm:$0x1]
  %v192 = vperm.slane %v191, 0
  %v193 = vmul.f32 %v37, %v192
  %v194 = vadd.f32 %v190, %v193
  %v195 = vld [vmem:[%s1 + $0x74] sm:$0x1]
  %v196 = vperm.slane %v195, 0
  %v197 = vmul.f32 %v39, %v196
  %v198 = vadd.f32 %v194, %v197
  %v199 = vld [vmem:[%s1 + $0x13] sm:$0x1]
  %v200 = vperm.slane %v199, 0
  %v201 = vmul.f32 %v41, %v200
  %v202 = vadd.f32 %v198, %v201
  %v203 = vld [vmem:[%s1 + $0x2c] sm:$0x1]
  %v204 = vperm.slane %v203, 0
  %v205 = vmul.f32 %v43, %v204
  %v206 = vadd.f32 %v202, %v205
  %v207 = vld [vmem:[%s1 + $0x45] sm:$0x1]
  %v208 = vperm.slane %v207, 0
  %v209 = vmul.f32 %v45, %v208
  %v210 = vadd.f32 %v206, %v209
  %v211 = vld [vmem:[%s1 + $0x5e] sm:$0x1]
  %v212 = vperm.slane %v211, 0
  %v213 = vmul.f32 %v47, %v212
  %v214 = vadd.f32 %v210, %v213
  %v215 = vld [vmem:[%s1 + $0x77] sm:$0x1]
  %v216 = vperm.slane %v215, 0
  %v217 = vmul.f32 %v49, %v216
  %v218 = vadd.f32 %v214, %v217
  %vm219 = vcmp.gt.f32.partialorder %v218, 0.0
  %v220 = vmul.f32 %v218, -0.208927
  %v221 = vsel %vm219, %v218, %v220
  %v222 = vsub.f32 0.0, %v221
  %v223 = vmax.f32 %v222, 0.0
  %v224 = vmin.f32 %v223, 6.0
  %s225 = scalar_lea.vmem %s2, 8
  %226 = vst [vmem:[%s225] sm:$0xff] %v224
  %v227 = vld [vmem:[%s1 + $0x2] sm:$0x1]
  %v228 = vperm.slane %v227, 0
  %v229 = vmul.f32 %v11, %v228
  %v230 = vadd.f32 %v51, %v229
  %v231 = vld [vmem:[%s1 + $0x1b] sm:$0x1]
  %v232 = vperm.slane %v231, 0
  %v233 = vmul.f32 %v13, %v232
  %v234 = vadd.f32 %v230, %v233
  %v235 = vld [vmem:[%s1 + $0x34] sm:$0x1]
  %v236 = vperm.slane %v235, 0
  %v237 = vmul.f32 %v15, %v236
  %v238 = vadd.f32 %v234, %v237
  %v239 = vld [vmem:[%s1 + $0x4d] sm:$0x1]
  %v240 = vperm.slane %v239, 0
  %v241 = vmul.f32 %v17, %v240
  %v242 = vadd.f32 %v238, %v241
  %v243 = vld [vmem:[%s1 + $0x66] sm:$0x1]
  %v244 = vperm.slane %v243, 0
  %v245 = vmul.f32 %v19, %v244
  %v246 = vadd.f32 %v242, %v245
  %v247 = vld [vmem:[%s1 + $0x11] sm:$0x1]
  %v248 = vperm.slane %v247, 0
  %v249 = vmul.f32 %v31, %v248
  %v250 = vadd.f32 %v246, %v249
  %v251 = vld [vmem:[%s1 + $0x2a] sm:$0x1]
  %v252 = vperm.slane %v251, 0
  %v253 = vmul.f32 %v33, %v252
  %v254 = vadd.f32 %v250, %v253
  %v255 = vld [vmem:[%s1 + $0x43] sm:$0x1]
  %v256 = vperm.slane %v255, 0
  %v257 = vmul.f32 %v35, %v256
  %v258 = vadd.f32 %v254, %v257
  %v259 = vld [vmem:[%s1 + $0x5c] sm:$0x1]
  %v260 = vperm.slane %v259, 0
  %v261 = vmul.f32 %v37, %v260
  %v262 = vadd.f32 %v258, %v261
  %v263 = vld [vmem:[%s1 + $0x75] sm:$0x1]
  %v264 = vperm.slane %v263, 0
  %v265 = vmul.f32 %v39, %v264
  %v266 = vadd.f32 %v262, %v265
  %vm267 = vcmp.gt.f32.partialorder %v266, 0.0
  %v268 = vmul.f32 %v266, -0.208927
  %v269 = vsel %vm267, %v266, %v268
  %v270 = vsub.f32 0.0, %v269
  %v271 = vmax.f32 %v270, 0.0
  %v272 = vmin.f32 %v271, 6.0
  %s273 = scalar_lea.vmem %s2, 16
  %274 = vst [vmem:[%s273] sm:$0xff] %v272
  %v275 = vld [vmem:[%s1 + $0x5] sm:$0x1]
  %v276 = vperm.slane %v275, 0
  %v277 = vmul.f32 %v11, %v276
  %v278 = vadd.f32 %v51, %v277
  %v279 = vld [vmem:[%s1 + $0x1e] sm:$0x1]
  %v280 = vperm.slane %v279, 0
  %v281 = vmul.f32 %v13, %v280
  %v282 = vadd.f32 %v278, %v281
  %v283 = vld [vmem:[%s1 + $0x37] sm:$0x1]
  %v284 = vperm.slane %v283, 0
  %v285 = vmul.f32 %v15, %v284
  %v286 = vadd.f32 %v282, %v285
  %v287 = vld [vmem:[%s1 + $0x50] sm:$0x1]
  %v288 = vperm.slane %v287, 0
  %v289 = vmul.f32 %v17, %v288
  %v290 = vadd.f32 %v286, %v289
  %v291 = vld [vmem:[%s1 + $0x69] sm:$0x1]
  %v292 = vperm.slane %v291, 0
  %v293 = vmul.f32 %v19, %v292
  %v294 = vadd.f32 %v290, %v293
  %v295 = vld [vmem:[%s1 + $0x8] sm:$0x1]
  %v296 = vperm.slane %v295, 0
  %v297 = vmul.f32 %v21, %v296
  %v298 = vadd.f32 %v294, %v297
  %v299 = vld [vmem:[%s1 + $0x21] sm:$0x1]
  %v300 = vperm.slane %v299, 0
  %v301 = vmul.f32 %v23, %v300
  %v302 = vadd.f32 %v298, %v301
  %v303 = vld [vmem:[%s1 + $0x3a] sm:$0x1]
  %v304 = vperm.slane %v303, 0
  %v305 = vmul.f32 %v25, %v304
  %v306 = vadd.f32 %v302, %v305
  %v307 = vld [vmem:[%s1 + $0x53] sm:$0x1]
  %v308 = vperm.slane %v307, 0
  %v309 = vmul.f32 %v27, %v308
  %v310 = vadd.f32 %v306, %v309
  %v311 = vld [vmem:[%s1 + $0x6c] sm:$0x1]
  %v312 = vperm.slane %v311, 0
  %v313 = vmul.f32 %v29, %v312
  %v314 = vadd.f32 %v310, %v313
  %v315 = vld [vmem:[%s1 + $0x14] sm:$0x1]
  %v316 = vperm.slane %v315, 0
  %v317 = vmul.f32 %v31, %v316
  %v318 = vadd.f32 %v314, %v317
  %v319 = vld [vmem:[%s1 + $0x2d] sm:$0x1]
  %v320 = vperm.slane %v319, 0
  %v321 = vmul.f32 %v33, %v320
  %v322 = vadd.f32 %v318, %v321
  %v323 = vld [vmem:[%s1 + $0x46] sm:$0x1]
  %v324 = vperm.slane %v323, 0
  %v325 = vmul.f32 %v35, %v324
  %v326 = vadd.f32 %v322, %v325
  %v327 = vld [vmem:[%s1 + $0x5f] sm:$0x1]
  %v328 = vperm.slane %v327, 0
  %v329 = vmul.f32 %v37, %v328
  %v330 = vadd.f32 %v326, %v329
  %v331 = vld [vmem:[%s1 + $0x78] sm:$0x1]
  %v332 = vperm.slane %v331, 0
  %v333 = vmul.f32 %v39, %v332
  %v334 = vadd.f32 %v330, %v333
  %v335 = vld [vmem:[%s1 + $0x17] sm:$0x1]
  %v336 = vperm.slane %v335, 0
  %v337 = vmul.f32 %v41, %v336
  %v338 = vadd.f32 %v334, %v337
  %v339 = vld [vmem:[%s1 + $0x30] sm:$0x1]
  %v340 = vperm.slane %v339, 0
  %v341 = vmul.f32 %v43, %v340
  %v342 = vadd.f32 %v338, %v341
  %v343 = vld [vmem:[%s1 + $0x49] sm:$0x1]
  %v344 = vperm.slane %v343, 0
  %v345 = vmul.f32 %v45, %v344
  %v346 = vadd.f32 %v342, %v345
  %v347 = vld [vmem:[%s1 + $0x62] sm:$0x1]
  %v348 = vperm.slane %v347, 0
  %v349 = vmul.f32 %v47, %v348
  %v350 = vadd.f32 %v346, %v349
  %v351 = vld [vmem:[%s1 + $0x7b] sm:$0x1]
  %v352 = vperm.slane %v351, 0
  %v353 = vmul.f32 %v49, %v352
  %v354 = vadd.f32 %v350, %v353
  %vm355 = vcmp.gt.f32.partialorder %v354, 0.0
  %v356 = vmul.f32 %v354, -0.208927
  %v357 = vsel %vm355, %v354, %v356
  %v358 = vsub.f32 0.0, %v357
  %v359 = vmax.f32 %v358, 0.0
  %v360 = vmin.f32 %v359, 6.0
  %s361 = scalar_lea.vmem %s2, 24
  %362 = vst [vmem:[%s361] sm:$0xff] %v360
  %v363 = vld [vmem:[%s1 + $0x6] sm:$0x1]
  %v364 = vperm.slane %v363, 0
  %v365 = vmul.f32 %v11, %v364
  %v366 = vadd.f32 %v51, %v365
  %v367 = vld [vmem:[%s1 + $0x1f] sm:$0x1]
  %v368 = vperm.slane %v367, 0
  %v369 = vmul.f32 %v13, %v368
  %v370 = vadd.f32 %v366, %v369
  %v371 = vld [vmem:[%s1 + $0x38] sm:$0x1]
  %v372 = vperm.slane %v371, 0
  %v373 = vmul.f32 %v15, %v372
  %v374 = vadd.f32 %v370, %v373
  %v375 = vld [vmem:[%s1 + $0x51] sm:$0x1]
  %v376 = vperm.slane %v375, 0
  %v377 = vmul.f32 %v17, %v376
  %v378 = vadd.f32 %v374, %v377
  %v379 = vld [vmem:[%s1 + $0x6a] sm:$0x1]
  %v380 = vperm.slane %v379, 0
  %v381 = vmul.f32 %v19, %v380
  %v382 = vadd.f32 %v378, %v381
  %v383 = vld [vmem:[%s1 + $0x9] sm:$0x1]
  %v384 = vperm.slane %v383, 0
  %v385 = vmul.f32 %v21, %v384
  %v386 = vadd.f32 %v382, %v385
  %v387 = vld [vmem:[%s1 + $0x22] sm:$0x1]
  %v388 = vperm.slane %v387, 0
  %v389 = vmul.f32 %v23, %v388
  %v390 = vadd.f32 %v386, %v389
  %v391 = vld [vmem:[%s1 + $0x3b] sm:$0x1]
  %v392 = vperm.slane %v391, 0
  %v393 = vmul.f32 %v25, %v392
  %v394 = vadd.f32 %v390, %v393
  %v395 = vld [vmem:[%s1 + $0x54] sm:$0x1]
  %v396 = vperm.slane %v395, 0
  %v397 = vmul.f32 %v27, %v396
  %v398 = vadd.f32 %v394, %v397
  %v399 = vld [vmem:[%s1 + $0x6d] sm:$0x1]
  %v400 = vperm.slane %v399, 0
  %v401 = vmul.f32 %v29, %v400
  %v402 = vadd.f32 %v398, %v401
  %v403 = vld [vmem:[%s1 + $0x15] sm:$0x1]
  %v404 = vperm.slane %v403, 0
  %v405 = vmul.f32 %v31, %v404
  %v406 = vadd.f32 %v402, %v405
  %v407 = vld [vmem:[%s1 + $0x2e] sm:$0x1]
  %v408 = vperm.slane %v407, 0
  %v409 = vmul.f32 %v33, %v408
  %v410 = vadd.f32 %v406, %v409
  %v411 = vld [vmem:[%s1 + $0x47] sm:$0x1]
  %v412 = vperm.slane %v411, 0
  %v413 = vmul.f32 %v35, %v412
  %v414 = vadd.f32 %v410, %v413
  %v415 = vld [vmem:[%s1 + $0x60] sm:$0x1]
  %v416 = vperm.slane %v415, 0
  %v417 = vmul.f32 %v37, %v416
  %v418 = vadd.f32 %v414, %v417
  %v419 = vld [vmem:[%s1 + $0x79] sm:$0x1]
  %v420 = vperm.slane %v419, 0
  %v421 = vmul.f32 %v39, %v420
  %v422 = vadd.f32 %v418, %v421
  %v423 = vld [vmem:[%s1 + $0x18] sm:$0x1]
  %v424 = vperm.slane %v423, 0
  %v425 = vmul.f32 %v41, %v424
  %v426 = vadd.f32 %v422, %v425
  %v427 = vld [vmem:[%s1 + $0x31] sm:$0x1]
  %v428 = vperm.slane %v427, 0
  %v429 = vmul.f32 %v43, %v428
  %v430 = vadd.f32 %v426, %v429
  %v431 = vld [vmem:[%s1 + $0x4a] sm:$0x1]
  %v432 = vperm.slane %v431, 0
  %v433 = vmul.f32 %v45, %v432
  %v434 = vadd.f32 %v430, %v433
  %v435 = vld [vmem:[%s1 + $0x63] sm:$0x1]
  %v436 = vperm.slane %v435, 0
  %v437 = vmul.f32 %v47, %v436
  %v438 = vadd.f32 %v434, %v437
  %v439 = vld [vmem:[%s1 + $0x7c] sm:$0x1]
  %v440 = vperm.slane %v439, 0
  %v441 = vmul.f32 %v49, %v440
  %v442 = vadd.f32 %v438, %v441
  %vm443 = vcmp.gt.f32.partialorder %v442, 0.0
  %v444 = vmul.f32 %v442, -0.208927
  %v445 = vsel %vm443, %v442, %v444
  %v446 = vsub.f32 0.0, %v445
  %v447 = vmax.f32 %v446, 0.0
  %v448 = vmin.f32 %v447, 6.0
  %s449 = scalar_lea.vmem %s2, 32
  %450 = vst [vmem:[%s449] sm:$0xff] %v448
  %v451 = vld [vmem:[%s1 + $0x7] sm:$0x1]
  %v452 = vperm.slane %v451, 0
  %v453 = vmul.f32 %v11, %v452
  %v454 = vadd.f32 %v51, %v453
  %v455 = vld [vmem:[%s1 + $0x20] sm:$0x1]
  %v456 = vperm.slane %v455, 0
  %v457 = vmul.f32 %v13, %v456
  %v458 = vadd.f32 %v454, %v457
  %v459 = vld [vmem:[%s1 + $0x39] sm:$0x1]
  %v460 = vperm.slane %v459, 0
  %v461 = vmul.f32 %v15, %v460
  %v462 = vadd.f32 %v458, %v461
  %v463 = vld [vmem:[%s1 + $0x52] sm:$0x1]
  %v464 = vperm.slane %v463, 0
  %v465 = vmul.f32 %v17, %v464
  %v466 = vadd.f32 %v462, %v465
  %v467 = vld [vmem:[%s1 + $0x6b] sm:$0x1]
  %v468 = vperm.slane %v467, 0
  %v469 = vmul.f32 %v19, %v468
  %v470 = vadd.f32 %v466, %v469
  %v471 = vld [vmem:[%s1 + $0x16] sm:$0x1]
  %v472 = vperm.slane %v471, 0
  %v473 = vmul.f32 %v31, %v472
  %v474 = vadd.f32 %v470, %v473
  %v475 = vld [vmem:[%s1 + $0x2f] sm:$0x1]
  %v476 = vperm.slane %v475, 0
  %v477 = vmul.f32 %v33, %v476
  %v478 = vadd.f32 %v474, %v477
  %v479 = vld [vmem:[%s1 + $0x48] sm:$0x1]
  %v480 = vperm.slane %v479, 0
  %v481 = vmul.f32 %v35, %v480
  %v482 = vadd.f32 %v478, %v481
  %v483 = vld [vmem:[%s1 + $0x61] sm:$0x1]
  %v484 = vperm.slane %v483, 0
  %v485 = vmul.f32 %v37, %v484
  %v486 = vadd.f32 %v482, %v485
  %v487 = vld [vmem:[%s1 + $0x7a] sm:$0x1]
  %v488 = vperm.slane %v487, 0
  %v489 = vmul.f32 %v39, %v488
  %v490 = vadd.f32 %v486, %v489
  %vm491 = vcmp.gt.f32.partialorder %v490, 0.0
  %v492 = vmul.f32 %v490, -0.208927
  %v493 = vsel %vm491, %v490, %v492
  %v494 = vsub.f32 0.0, %v493
  %v495 = vmax.f32 %v494, 0.0
  %v496 = vmin.f32 %v495, 6.0
  %s497 = scalar_lea.vmem %s2, 40
  %498 = vst [vmem:[%s497] sm:$0xff] %v496
  %v499 = vld [vmem:[%s1 + $0xa] sm:$0x1]
  %v500 = vperm.slane %v499, 0
  %v501 = vmul.f32 %v11, %v500
  %v502 = vadd.f32 %v51, %v501
  %v503 = vld [vmem:[%s1 + $0x23] sm:$0x1]
  %v504 = vperm.slane %v503, 0
  %v505 = vmul.f32 %v13, %v504
  %v506 = vadd.f32 %v502, %v505
  %v507 = vld [vmem:[%s1 + $0x3c] sm:$0x1]
  %v508 = vperm.slane %v507, 0
  %v509 = vmul.f32 %v15, %v508
  %v510 = vadd.f32 %v506, %v509
  %v511 = vld [vmem:[%s1 + $0x55] sm:$0x1]
  %v512 = vperm.slane %v511, 0
  %v513 = vmul.f32 %v17, %v512
  %v514 = vadd.f32 %v510, %v513
  %v515 = vld [vmem:[%s1 + $0x6e] sm:$0x1]
  %v516 = vperm.slane %v515, 0
  %v517 = vmul.f32 %v19, %v516
  %v518 = vadd.f32 %v514, %v517
  %v519 = vld [vmem:[%s1 + $0xd] sm:$0x1]
  %v520 = vperm.slane %v519, 0
  %v521 = vmul.f32 %v21, %v520
  %v522 = vadd.f32 %v518, %v521
  %v523 = vld [vmem:[%s1 + $0x26] sm:$0x1]
  %v524 = vperm.slane %v523, 0
  %v525 = vmul.f32 %v23, %v524
  %v526 = vadd.f32 %v522, %v525
  %v527 = vld [vmem:[%s1 + $0x3f] sm:$0x1]
  %v528 = vperm.slane %v527, 0
  %v529 = vmul.f32 %v25, %v528
  %v530 = vadd.f32 %v526, %v529
  %v531 = vld [vmem:[%s1 + $0x58] sm:$0x1]
  %v532 = vperm.slane %v531, 0
  %v533 = vmul.f32 %v27, %v532
  %v534 = vadd.f32 %v530, %v533
  %v535 = vld [vmem:[%s1 + $0x71] sm:$0x1]
  %v536 = vperm.slane %v535, 0
  %v537 = vmul.f32 %v29, %v536
  %v538 = vadd.f32 %v534, %v537
  %vm539 = vcmp.gt.f32.partialorder %v538, 0.0
  %v540 = vmul.f32 %v538, -0.208927
  %v541 = vsel %vm539, %v538, %v540
  %v542 = vsub.f32 0.0, %v541
  %v543 = vmax.f32 %v542, 0.0
  %v544 = vmin.f32 %v543, 6.0
  %s545 = scalar_lea.vmem %s2, 48
  %546 = vst [vmem:[%s545] sm:$0xff] %v544
  %v547 = vld [vmem:[%s1 + $0xb] sm:$0x1]
  %v548 = vperm.slane %v547, 0
  %v549 = vmul.f32 %v11, %v548
  %v550 = vadd.f32 %v51, %v549
  %v551 = vld [vmem:[%s1 + $0x24] sm:$0x1]
  %v552 = vperm.slane %v551, 0
  %v553 = vmul.f32 %v13, %v552
  %v554 = vadd.f32 %v550, %v553
  %v555 = vld [vmem:[%s1 + $0x3d] sm:$0x1]
  %v556 = vperm.slane %v555, 0
  %v557 = vmul.f32 %v15, %v556
  %v558 = vadd.f32 %v554, %v557
  %v559 = vld [vmem:[%s1 + $0x56] sm:$0x1]
  %v560 = vperm.slane %v559, 0
  %v561 = vmul.f32 %v17, %v560
  %v562 = vadd.f32 %v558, %v561
  %v563 = vld [vmem:[%s1 + $0x6f] sm:$0x1]
  %v564 = vperm.slane %v563, 0
  %v565 = vmul.f32 %v19, %v564
  %v566 = vadd.f32 %v562, %v565
  %v567 = vld [vmem:[%s1 + $0xe] sm:$0x1]
  %v568 = vperm.slane %v567, 0
  %v569 = vmul.f32 %v21, %v568
  %v570 = vadd.f32 %v566, %v569
  %v571 = vld [vmem:[%s1 + $0x27] sm:$0x1]
  %v572 = vperm.slane %v571, 0
  %v573 = vmul.f32 %v23, %v572
  %v574 = vadd.f32 %v570, %v573
  %v575 = vld [vmem:[%s1 + $0x40] sm:$0x1]
  %v576 = vperm.slane %v575, 0
  %v577 = vmul.f32 %v25, %v576
  %v578 = vadd.f32 %v574, %v577
  %v579 = vld [vmem:[%s1 + $0x59] sm:$0x1]
  %v580 = vperm.slane %v579, 0
  %v581 = vmul.f32 %v27, %v580
  %v582 = vadd.f32 %v578, %v581
  %v583 = vld [vmem:[%s1 + $0x72] sm:$0x1]
  %v584 = vperm.slane %v583, 0
  %v585 = vmul.f32 %v29, %v584
  %v586 = vadd.f32 %v582, %v585
  %vm587 = vcmp.gt.f32.partialorder %v586, 0.0
  %v588 = vmul.f32 %v586, -0.208927
  %v589 = vsel %vm587, %v586, %v588
  %v590 = vsub.f32 0.0, %v589
  %v591 = vmax.f32 %v590, 0.0
  %v592 = vmin.f32 %v591, 6.0
  %s593 = scalar_lea.vmem %s2, 56
  %594 = vst [vmem:[%s593] sm:$0xff] %v592
  %v595 = vld [vmem:[%s1 + $0xc] sm:$0x1]
  %v596 = vperm.slane %v595, 0
  %v597 = vmul.f32 %v11, %v596
  %v598 = vadd.f32 %v51, %v597
  %v599 = vld [vmem:[%s1 + $0x25] sm:$0x1]
  %v600 = vperm.slane %v599, 0
  %v601 = vmul.f32 %v13, %v600
  %v602 = vadd.f32 %v598, %v601
  %v603 = vld [vmem:[%s1 + $0x3e] sm:$0x1]
  %v604 = vperm.slane %v603, 0
  %v605 = vmul.f32 %v15, %v604
  %v606 = vadd.f32 %v602, %v605
  %v607 = vld [vmem:[%s1 + $0x57] sm:$0x1]
  %v608 = vperm.slane %v607, 0
  %v609 = vmul.f32 %v17, %v608
  %v610 = vadd.f32 %v606, %v609
  %v611 = vld [vmem:[%s1 + $0x70] sm:$0x1]
  %v612 = vperm.slane %v611, 0
  %v613 = vmul.f32 %v19, %v612
  %v614 = vadd.f32 %v610, %v613
  %vm615 = vcmp.gt.f32.partialorder %v614, 0.0
  %v616 = vmul.f32 %v614, -0.208927
  %v617 = vsel %vm615, %v614, %v616
  %v618 = vsub.f32 0.0, %v617
  %v619 = vmax.f32 %v618, 0.0
  %v620 = vmin.f32 %v619, 6.0
  %s621 = scalar_lea.vmem %s2, 64
  %622 = vst [vmem:[%s621] sm:$0xff] %v620
  // Predicated region
  $region10: #{conv_transpose_model.1} parent=0 // pred_check
    _
  $region11: #{conv_transpose_model.1} parent=0 // pred_check_branch
    %624 = sbr.rel (0) target = $region13
  $region12: #{conv_transpose_model.1} parent=0 // pred_region
    _
  $region13: #{conv_transpose_model.1} parent=0 // pred_fallthru
    _
  // Predicated region
  $region14: #{conv_transpose_model.1} parent=0 // pred_check
    _
  $region15: #{conv_transpose_model.1} parent=0 // pred_check_branch
    %626 = sbr.rel (0) target = $region17
  $region16: #{conv_transpose_model.1} parent=0 // pred_region
    _
  $region17: #{conv_transpose_model.1} parent=0 // pred_fallthru
    _

</llo_original>
